<compile_context>
chip_gen: v6e
topology: v6e:2x2x1
jax: 0.10.0
libtpu: 0.0.40
codegen_flags: <defaults>
</compile_context>

<pallas_src>
import jax
import jax.numpy as jnp
from jax.experimental import pallas as pl
from jax.experimental.pallas import tpu as pltpu

SUBLANE = 8   # TPU sublane width
CHUNK_T = 4   # timesteps per grid step (pipeline chunk along time)


def bilstm_chunk_kernel(lens_ref, xf_ref, xb_ref, wih_f_ref, wih_b_ref,
                        bf_ref, bb_ref, whh_bd_ref,
                        outf_ref, outb_ref, hid_ref, cell_ref,
                        gxf_ref, gxb_ref):
    """One time chunk of the fused bidirectional masked LSTM.

    lens   : (Bp, 1)       int32  valid lengths (0 for padded batch rows)
    xf/xb  : (CT*Bp, E)    bf16   embedded inputs, forward / backward chunk
    wih_*  : (E, 4H)       bf16   input->gate weights, gate order (i,f,o,g)
    b*     : (1, 4H)       f32    combined b_ih + b_hh biases, same order
    whh_bd : (2H, 8H)      bf16   blockdiag(Whh_f^T, Whh_b^T), same order
    outf/outb : (CT*Bp, H) f32    raw (pre-LayerNorm) directional outputs
    hid/cell  : (2, Bp, H) f32    resident accumulators == carried h/c state
    gx*    : (CT*Bp, 4H)   f32    scratch: per-chunk input->gate terms
    """
    CTB = xf_ref.shape[0]
    Bp = lens_ref.shape[0]
    CT = CTB // Bp
    H = hid_ref.shape[2]
    H3, H4 = 3 * H, 4 * H
    g = pl.program_id(0)
    NC = pl.num_programs(0)
    T_pad = NC * CT

    @pl.when(g == 0)
    def _():
        hid_ref[...] = jnp.zeros_like(hid_ref)
        cell_ref[...] = jnp.zeros_like(cell_ref)

    # Per-chunk input->gate projections: one big MXU matmul per direction,
    # bf16 operands / f32 accumulation, biases folded in.
    gxf_ref[...] = (jnp.dot(xf_ref[...], wih_f_ref[...],
                            preferred_element_type=jnp.float32) + bf_ref[...])
    gxb_ref[...] = (jnp.dot(xb_ref[...], wih_b_ref[...],
                            preferred_element_type=jnp.float32) + bb_ref[...])

    lens = lens_ref[...]              # (Bp, 1) int32
    whh_bd = whh_bd_ref[...]          # (2H, 8H) bf16

    hf = hid_ref[0]
    hb = hid_ref[1]
    cf = cell_ref[0]
    cb = cell_ref[1]

    def cell_update(gates, c):
        # gate order (i, f, o, g): one sigmoid over 3H lanes, one tanh over H
        sfo = jax.nn.sigmoid(gates[:, 0:H3])
        gg = jnp.tanh(gates[:, H3:H4])
        c_new = sfo[:, H:2 * H] * c + sfo[:, 0:H] * gg
        h_new = sfo[:, 2 * H:H3] * jnp.tanh(c_new)
        return h_new, c_new

    # TODO(synk): switch to lax.fori_loop(..., unroll=2..4) with pl.ds offsets
    # if CHUNK_T is raised well beyond ~16 (bounds code size / vreg pressure).
    for s in range(CT):
        tf = g * CT + s                  # forward global timestep
        tb = T_pad - 1 - tf              # backward global timestep
        sb = CT - 1 - s                  # backward local row block in chunk

        # single fused recurrent matmul for both directions (block-diag Whh),
        # bf16 operands / f32 accumulation, on the latency-critical path
        h_cat = jnp.concatenate([hf, hb], axis=1).astype(jnp.bfloat16)
        g_rec = jnp.dot(h_cat, whh_bd, preferred_element_type=jnp.float32)

        gf = gxf_ref[s * Bp:(s + 1) * Bp, :] + g_rec[:, 0:H4]
        gb = gxb_ref[sb * Bp:(sb + 1) * Bp, :] + g_rec[:, H4:2 * H4]

        hf_new, cf_new = cell_update(gf, cf)
        hb_new, cb_new = cell_update(gb, cb)

        vf = tf < lens                   # (Bp, 1) bool
        vb = tb < lens

        # raw directional outputs; padded positions -> 0 (pad_packed).
        # TODO(synk): for H < 64 these are sub-128-lane masked stores; the
        # production model (H >= 64) gets lane-dense stores for free.
        outf_ref[s * Bp:(s + 1) * Bp, :] = jnp.where(vf, hf_new, 0.0)
        outb_ref[sb * Bp:(sb + 1) * Bp, :] = jnp.where(vb, hb_new, 0.0)

        hf = jnp.where(vf, hf_new, hf)
        cf = jnp.where(vf, cf_new, cf)
        hb = jnp.where(vb, hb_new, hb)
        cb = jnp.where(vb, cb_new, cb)

    # write carried state back into the resident output accumulators
    hid_ref[0] = hf
    hid_ref[1] = hb
    cell_ref[0] = cf
    cell_ref[1] = cb


def layernorm_kernel(gamma_ref, beta_ref, yf_ref, yb_ref, out_ref):
    """LayerNorm(concat(fwd, bwd)) over one row chunk, single-pass stats."""
    y = jnp.concatenate([yf_ref[...], yb_ref[...]], axis=1)   # (rows, 2H) f32
    mean = jnp.mean(y, axis=-1, keepdims=True)
    var = jnp.mean(y * y, axis=-1, keepdims=True) - mean * mean
    inv = jax.lax.rsqrt(var + 1e-5)
    out_ref[...] = (y - mean) * inv * gamma_ref[...] + beta_ref[...]


def _vmem_capacity_bytes():
    try:
        cap = getattr(pltpu.get_tpu_info(), "vmem_capacity_bytes", None)
        if cap:
            return int(cap)
    except Exception:
        pass
    return 64 * 1024 * 1024   # conservative fallback (v7x per-core VMEM)


@jax.jit
def encoder_forward(src, src_len, params):
    """src: (B, T) int32 token ids (0 = pad); src_len: (B,) int32 lengths."""
    B, T = src.shape
    emb = params["embedding"]                      # (V, E)
    E = emb.shape[1]
    H = params["whh_f"].shape[1]                   # whh_f is (4H, H)
    H4 = 4 * H

    Bp = ((B + SUBLANE - 1) // SUBLANE) * SUBLANE  # pad batch to sublane width
    CT = min(CHUNK_T, T)
    NC = -(-T // CT)
    T_pad = NC * CT                                # pad time to chunk multiple

    # ---- tokens -> time-major flattened embedded inputs (bf16 MXU operand) -
    ids = jnp.zeros((T_pad, Bp), jnp.int32).at[:T, :B].set(
        jnp.transpose(src).astype(jnp.int32))
    x2d = jnp.take(emb, ids.reshape(T_pad * Bp), axis=0).astype(jnp.bfloat16)
    lens = jnp.zeros((Bp, 1), jnp.int32).at[:B, 0].set(src_len.astype(jnp.int32))

    # ---- weights: gate order (i,f,g,o) -> (i,f,o,g), pre-transposed, bf16 --
    perm = jnp.concatenate([jnp.arange(0, H), jnp.arange(H, 2 * H),
                            jnp.arange(3 * H, 4 * H), jnp.arange(2 * H, 3 * H)])
    wih_f_t = jnp.transpose(params["wih_f"][perm]).astype(jnp.bfloat16)  # (E,4H)
    wih_b_t = jnp.transpose(params["wih_b"][perm]).astype(jnp.bfloat16)
    b_f = (params["bih_f"] + params["bhh_f"])[perm].reshape(1, H4).astype(jnp.float32)
    b_b = (params["bih_b"] + params["bhh_b"])[perm].reshape(1, H4).astype(jnp.float32)
    # block-diagonal recurrent weight: one MXU push serves both directions
    whh_bd = jnp.zeros((2 * H, 2 * H4), jnp.float32)
    whh_bd = whh_bd.at[:H, :H4].set(jnp.transpose(params["whh_f"][perm]))
    whh_bd = whh_bd.at[H:, H4:].set(jnp.transpose(params["whh_b"][perm]))
    whh_bd = whh_bd.astype(jnp.bfloat16)
    gamma = params["gamma"].reshape(1, 2 * H).astype(jnp.float32)
    beta = params["beta"].reshape(1, 2 * H).astype(jnp.float32)

    # ---- generation-aware VMEM limit (v7x = 64 MiB physical) ---------------
    step_bytes = (
        2 * (CT * Bp * E * 2)                      # xf + xb bf16 blocks
        + 2 * (CT * Bp * H * 4)                    # outf + outb f32 blocks
        + 2 * (CT * Bp * H4 * 4)                   # gx scratch f32
        + 2 * (E * H4 * 2) + (2 * H) * (2 * H4) * 2  # wih_f/b + whh_bd bf16
        + 2 * (H4 * 4) + 2 * (2 * Bp * H * 4)      # biases + hid/cell
        + Bp * 4)                                  # lens
    vmem_limit = int(min(int(0.9 * _vmem_capacity_bytes()),
                         max(4 * step_bytes, 16 * 1024 * 1024)))

    # ---- kernel 1: pipelined bidirectional masked LSTM over time chunks ----
    # TODO(synk): on v7x the two directions could additionally be split across
    # the two TensorCores (grid axis of size 2, "parallel") for ~2x on the
    # serial recurrence; kept single-core here for portability.
    out_f, out_b, hidden_p, cell_p = pl.pallas_call(
        bilstm_chunk_kernel,
        out_shape=(
            jax.ShapeDtypeStruct((T_pad * Bp, H), jnp.float32),
            jax.ShapeDtypeStruct((T_pad * Bp, H), jnp.float32),
            jax.ShapeDtypeStruct((2, Bp, H), jnp.float32),
            jax.ShapeDtypeStruct((2, Bp, H), jnp.float32),
        ),
        grid_spec=pltpu.PrefetchScalarGridSpec(
            num_scalar_prefetch=0,
            grid=(NC,),
            in_specs=[
                pl.BlockSpec((Bp, 1), lambda g: (0, 0)),                # lens
                pl.BlockSpec((CT * Bp, E), lambda g: (g, 0)),           # x fwd
                pl.BlockSpec((CT * Bp, E), lambda g: (NC - 1 - g, 0)),  # x bwd
                pl.BlockSpec((E, H4), lambda g: (0, 0)),                # wih_f
                pl.BlockSpec((E, H4), lambda g: (0, 0)),                # wih_b
                pl.BlockSpec((1, H4), lambda g: (0, 0)),                # b_f
                pl.BlockSpec((1, H4), lambda g: (0, 0)),                # b_b
                pl.BlockSpec((2 * H, 2 * H4), lambda g: (0, 0)),        # whh_bd
            ],
            out_specs=(
                pl.BlockSpec((CT * Bp, H), lambda g: (g, 0)),           # out fwd
                pl.BlockSpec((CT * Bp, H), lambda g: (NC - 1 - g, 0)),  # out bwd
                pl.BlockSpec((2, Bp, H), lambda g: (0, 0, 0)),          # hidden
                pl.BlockSpec((2, Bp, H), lambda g: (0, 0, 0)),          # cell
            ),
            scratch_shapes=[pltpu.VMEM((CT * Bp, H4), jnp.float32),
                            pltpu.VMEM((CT * Bp, H4), jnp.float32)]),
        compiler_params=pltpu.CompilerParams(
            dimension_semantics=("arbitrary",),
            vmem_limit_bytes=vmem_limit),
    )(lens, x2d, x2d, wih_f_t, wih_b_t, b_f, b_b, whh_bd)

    # ---- kernel 2: LayerNorm(concat(fwd, bwd)) epilogue, pipelined ---------
    out2d = pl.pallas_call(
        layernorm_kernel,
        out_shape=jax.ShapeDtypeStruct((T_pad * Bp, 2 * H), jnp.float32),
        grid_spec=pltpu.PrefetchScalarGridSpec(
            num_scalar_prefetch=0,
            grid=(NC,),
            in_specs=[
                pl.BlockSpec((1, 2 * H), lambda g: (0, 0)),
                pl.BlockSpec((1, 2 * H), lambda g: (0, 0)),
                pl.BlockSpec((CT * Bp, H), lambda g: (g, 0)),
                pl.BlockSpec((CT * Bp, H), lambda g: (g, 0)),
            ],
            out_specs=pl.BlockSpec((CT * Bp, 2 * H), lambda g: (g, 0))),
        compiler_params=pltpu.CompilerParams(
            dimension_semantics=("parallel",),
            vmem_limit_bytes=vmem_limit),
    )(gamma, beta, out_f, out_b)

    # back to PyTorch's batch_first layout, drop batch/time padding
    outputs = jnp.transpose(out2d.reshape(T_pad, Bp, 2 * H), (1, 0, 2))[:B, :T]
    return outputs, hidden_p[:, :B], cell_p[:, :B]


# ---------------- pure-JAX reference (for verification only) ---------------
def reference_forward(src, src_len, params):
    emb = params["embedding"]
    B, T = src.shape
    H = params["whh_f"].shape[1]
    x = jnp.transpose(jnp.take(emb, src, axis=0), (1, 0, 2)).astype(jnp.float32)
    lens = src_len.astype(jnp.int32)

    def run_dir(wih, whh, b, reverse):
        def step(carry, t):
            h, c = carry
            x_t = x[t]
            gates = x_t @ wih.T + h @ whh.T + b
            i = jax.nn.sigmoid(gates[:, :H])
            f = jax.nn.sigmoid(gates[:, H:2 * H])
            g = jnp.tanh(gates[:, 2 * H:3 * H])
            o = jax.nn.sigmoid(gates[:, 3 * H:])
            c_new = f * c + i * g
            h_new = o * jnp.tanh(c_new)
            valid = (t < lens)[:, None]
            h = jnp.where(valid, h_new, h)
            c = jnp.where(valid, c_new, c)
            out_t = jnp.where(valid, h_new, 0.0)
            return (h, c), out_t

        ts = jnp.arange(T - 1, -1, -1) if reverse else jnp.arange(T)
        (h, c), outs = jax.lax.scan(step, (jnp.zeros((B, H)), jnp.zeros((B, H))), ts)
        if reverse:
            outs = outs[::-1]
        return outs, h, c

    of, hfin, cfin = run_dir(params["wih_f"], params["whh_f"],
                             params["bih_f"] + params["bhh_f"], False)
    ob, hbin, cbin = run_dir(params["wih_b"], params["whh_b"],
                             params["bih_b"] + params["bhh_b"], True)
    cat = jnp.concatenate([of, ob], axis=-1)                       # (T, B, 2H)
    mean = jnp.mean(cat, axis=-1, keepdims=True)
    var = jnp.mean((cat - mean) ** 2, axis=-1, keepdims=True)
    normed = (cat - mean) * jax.lax.rsqrt(var + 1e-5)
    normed = normed * params["gamma"] + params["beta"]
    outputs = jnp.transpose(normed, (1, 0, 2))
    hidden = jnp.stack([hfin, hbin], axis=0)
    cell = jnp.stack([cfin, cbin], axis=0)
    return outputs, hidden, cell


def init_params(key, vocab_size, embed_size, hidden_size):
    ks = jax.random.split(key, 9)
    k = 1.0 / (hidden_size ** 0.5)
    H4 = 4 * hidden_size
    return {
        "embedding": jax.random.uniform(ks[0], (vocab_size, embed_size),
                                        jnp.float32, -0.3, 0.3),
        "wih_f": jax.random.uniform(ks[1], (H4, embed_size), jnp.float32, -k, k),
        "whh_f": jax.random.uniform(ks[2], (H4, hidden_size), jnp.float32, -k, k),
        "bih_f": jax.random.uniform(ks[3], (H4,), jnp.float32, -k, k),
        "bhh_f": jax.random.uniform(ks[4], (H4,), jnp.float32, -k, k),
        "wih_b": jax.random.uniform(ks[5], (H4, embed_size), jnp.float32, -k, k),
        "whh_b": jax.random.uniform(ks[6], (H4, hidden_size), jnp.float32, -k, k),
        "bih_b": jax.random.uniform(ks[7], (H4,), jnp.float32, -k, k),
        "bhh_b": jax.random.uniform(ks[8], (H4,), jnp.float32, -k, k),
        "gamma": jnp.ones((2 * hidden_size,), jnp.float32),
        "beta": jnp.zeros((2 * hidden_size,), jnp.float32),
    }


if __name__ == "__main__":
    B, T = 2, 8
    VOCAB, E, H = 20, 32, 32

    root = jax.random.PRNGKey(0)
    pkey, tkey = jax.random.split(root)
    params = init_params(pkey, VOCAB, E, H)

    # lengths: max length equals T so pad_packed output width matches src width
    src_len = jnp.array([8, 5], dtype=jnp.int32)
    src = jax.random.randint(tkey, (B, T), 1, VOCAB)
    valid_mask = jnp.arange(T)[None, :] < src_len[:, None]
    src = jnp.where(valid_mask, src, 0).astype(jnp.int32)   # pad token id = 0

    outputs, hidden, cell = encoder_forward(src, src_len, params)
    jax.block_until_ready((outputs, hidden, cell))

    ref_out, ref_h, ref_c = reference_forward(src, src_len, params)

    assert outputs.shape == (B, T, 2 * H)
    assert hidden.shape == (2, B, H)
    assert cell.shape == (2, B, H)
    assert bool(jnp.all(jnp.isfinite(outputs)))
    # hidden/cell compare directly against the f32 reference; the normalized
    # outputs get a slightly looser tolerance because LayerNorm amplifies the
    # bf16 (MXU-operand) rounding of the recurrent path by ~1/std per row.
    assert bool(jnp.allclose(hidden, ref_h, atol=2e-2, rtol=2e-2))
    assert bool(jnp.allclose(cell, ref_c, atol=2e-2, rtol=2e-2))
    assert bool(jnp.allclose(outputs, ref_out, atol=3e-2, rtol=3e-2))

    print("KERNEL_OK")
</pallas_src>

<mosaic_0001>
module attributes {stable_mosaic.version = 11 : i64} {
  func.func @bilstm_chunk_kernel(%arg0: i32, %arg1: memref<8x1xi32, #tpu.memory_space<vmem>>, %arg2: memref<32x32xbf16, #tpu.memory_space<vmem>>, %arg3: memref<32x32xbf16, #tpu.memory_space<vmem>>, %arg4: memref<32x128xbf16, #tpu.memory_space<vmem>>, %arg5: memref<32x128xbf16, #tpu.memory_space<vmem>>, %arg6: memref<1x128xf32, #tpu.memory_space<vmem>>, %arg7: memref<1x128xf32, #tpu.memory_space<vmem>>, %arg8: memref<64x256xbf16, #tpu.memory_space<vmem>>, %arg9: memref<32x32xf32, #tpu.memory_space<vmem>>, %arg10: memref<32x32xf32, #tpu.memory_space<vmem>>, %arg11: memref<2x8x32xf32, #tpu.memory_space<vmem>>, %arg12: memref<2x8x32xf32, #tpu.memory_space<vmem>>, %arg13: memref<32x128xf32, #tpu.memory_space<vmem>>, %arg14: memref<32x128xf32, #tpu.memory_space<vmem>>) attributes {dimension_semantics = [#tpu.dimension_semantics<arbitrary>], iteration_bounds = array<i64: 2>, scalar_prefetch = 0 : i64, scratch_operands = 2 : i64, tpu.core_type = #tpu.core_type<tc>, window_params = [{pipeline_mode = #tpu.pipeline_mode<synchronous>, transform_indices = @transform_0, window_bounds = array<i64: 8, 1>}, {transform_indices = @transform_1, window_bounds = array<i64: 32, 32>}, {transform_indices = @transform_2, window_bounds = array<i64: 32, 32>}, {pipeline_mode = #tpu.pipeline_mode<synchronous>, transform_indices = @transform_3, window_bounds = array<i64: 32, 128>}, {pipeline_mode = #tpu.pipeline_mode<synchronous>, transform_indices = @transform_4, window_bounds = array<i64: 32, 128>}, {pipeline_mode = #tpu.pipeline_mode<synchronous>, transform_indices = @transform_5, window_bounds = array<i64: 1, 128>}, {pipeline_mode = #tpu.pipeline_mode<synchronous>, transform_indices = @transform_6, window_bounds = array<i64: 1, 128>}, {pipeline_mode = #tpu.pipeline_mode<synchronous>, transform_indices = @transform_7, window_bounds = array<i64: 64, 256>}, {transform_indices = @transform_8, window_bounds = array<i64: 32, 32>}, {transform_indices = @transform_9, window_bounds = array<i64: 32, 32>}, {pipeline_mode = #tpu.pipeline_mode<synchronous>, transform_indices = @transform_10, window_bounds = array<i64: 2, 8, 32>}, {pipeline_mode = #tpu.pipeline_mode<synchronous>, transform_indices = @transform_11, window_bounds = array<i64: 2, 8, 32>}]} {
    %c0_i32 = arith.constant 0 : i32
    %0 = arith.cmpi eq, %arg0, %c0_i32 : i32
    %1 = arith.extui %0 : i1 to i32
    %c0_i32_0 = arith.constant 0 : i32
    %2 = arith.cmpi ne, %1, %c0_i32_0 : i32
    scf.if %2 {
      %cst_100 = arith.constant 0.000000e+00 : f32
      %319 = vector.broadcast %cst_100 : f32 to vector<2x8x32xf32>
      %c0_101 = arith.constant 0 : index
      %c0_102 = arith.constant 0 : index
      %c0_103 = arith.constant 0 : index
      %320 = vector.load %arg11[%c0_101, %c0_102, %c0_103] : memref<2x8x32xf32, #tpu.memory_space<vmem>>, vector<2x8x32xf32>
      tpu.vector_store %arg11[%c0_101, %c0_102, %c0_103], %319 {strides = array<i32>} : memref<2x8x32xf32, #tpu.memory_space<vmem>>, vector<2x8x32xf32>,
      %cst_104 = arith.constant 0.000000e+00 : f32
      %321 = vector.broadcast %cst_104 : f32 to vector<2x8x32xf32>
      %c0_105 = arith.constant 0 : index
      %c0_106 = arith.constant 0 : index
      %c0_107 = arith.constant 0 : index
      %322 = vector.load %arg12[%c0_105, %c0_106, %c0_107] : memref<2x8x32xf32, #tpu.memory_space<vmem>>, vector<2x8x32xf32>
      tpu.vector_store %arg12[%c0_105, %c0_106, %c0_107], %321 {strides = array<i32>} : memref<2x8x32xf32, #tpu.memory_space<vmem>>, vector<2x8x32xf32>,
    } else {
    }
    %c0 = arith.constant 0 : index
    %c0_1 = arith.constant 0 : index
    %3 = vector.load %arg2[%c0, %c0_1] : memref<32x32xbf16, #tpu.memory_space<vmem>>, vector<32x32xbf16>
    %c0_2 = arith.constant 0 : index
    %c0_3 = arith.constant 0 : index
    %4 = vector.load %arg4[%c0_2, %c0_3] : memref<32x128xbf16, #tpu.memory_space<vmem>>, vector<32x128xbf16>
    %cst = arith.constant dense<0.000000e+00> : vector<32x128xf32>
    %5 = tpu.matmul %3, %4, %cst {dimension_numbers = #tpu.dot_dimension_numbers<[1], [0], [0], [1], [0, 0, 1, 1], [], []>} : vector<32x32xbf16>, vector<32x128xbf16>, vector<32x128xf32> -> vector<32x128xf32>
    %c0_4 = arith.constant 0 : index
    %c0_5 = arith.constant 0 : index
    %6 = vector.load %arg6[%c0_4, %c0_5] : memref<1x128xf32, #tpu.memory_space<vmem>>, vector<1x128xf32>
    %7 = vector.broadcast %6 : vector<1x128xf32> to vector<32x128xf32>
    %8 = arith.addf %5, %7 : vector<32x128xf32>
    %c0_6 = arith.constant 0 : index
    %c0_7 = arith.constant 0 : index
    %9 = vector.load %arg13[%c0_6, %c0_7] : memref<32x128xf32, #tpu.memory_space<vmem>>, vector<32x128xf32>
    tpu.vector_store %arg13[%c0_6, %c0_7], %8 {strides = array<i32>} : memref<32x128xf32, #tpu.memory_space<vmem>>, vector<32x128xf32>,
    %c0_8 = arith.constant 0 : index
    %c0_9 = arith.constant 0 : index
    %10 = vector.load %arg3[%c0_8, %c0_9] : memref<32x32xbf16, #tpu.memory_space<vmem>>, vector<32x32xbf16>
    %c0_10 = arith.constant 0 : index
    %c0_11 = arith.constant 0 : index
    %11 = vector.load %arg5[%c0_10, %c0_11] : memref<32x128xbf16, #tpu.memory_space<vmem>>, vector<32x128xbf16>
    %cst_12 = arith.constant dense<0.000000e+00> : vector<32x128xf32>
    %12 = tpu.matmul %10, %11, %cst_12 {dimension_numbers = #tpu.dot_dimension_numbers<[1], [0], [0], [1], [0, 0, 1, 1], [], []>} : vector<32x32xbf16>, vector<32x128xbf16>, vector<32x128xf32> -> vector<32x128xf32>
    %c0_13 = arith.constant 0 : index
    %c0_14 = arith.constant 0 : index
    %13 = vector.load %arg7[%c0_13, %c0_14] : memref<1x128xf32, #tpu.memory_space<vmem>>, vector<1x128xf32>
    %14 = vector.broadcast %13 : vector<1x128xf32> to vector<32x128xf32>
    %15 = arith.addf %12, %14 : vector<32x128xf32>
    %c0_15 = arith.constant 0 : index
    %c0_16 = arith.constant 0 : index
    %16 = vector.load %arg14[%c0_15, %c0_16] : memref<32x128xf32, #tpu.memory_space<vmem>>, vector<32x128xf32>
    tpu.vector_store %arg14[%c0_15, %c0_16], %15 {strides = array<i32>} : memref<32x128xf32, #tpu.memory_space<vmem>>, vector<32x128xf32>,
    %c0_17 = arith.constant 0 : index
    %c0_18 = arith.constant 0 : index
    %17 = vector.load %arg1[%c0_17, %c0_18] : memref<8x1xi32, #tpu.memory_space<vmem>>, vector<8x1xi32>
    %c0_19 = arith.constant 0 : index
    %c0_20 = arith.constant 0 : index
    %18 = vector.load %arg8[%c0_19, %c0_20] : memref<64x256xbf16, #tpu.memory_space<vmem>>, vector<64x256xbf16>
    %c0_21 = arith.constant 0 : index
    %c0_22 = arith.constant 0 : index
    %c0_23 = arith.constant 0 : index
    %19 = vector.load %arg11[%c0_21, %c0_22, %c0_23] : memref<2x8x32xf32, #tpu.memory_space<vmem>>, vector<1x8x32xf32>
    %20 = vector.shape_cast %19 : vector<1x8x32xf32> to vector<8x32xf32>
    %c1 = arith.constant 1 : index
    %c0_24 = arith.constant 0 : index
    %c0_25 = arith.constant 0 : index
    %21 = vector.load %arg11[%c1, %c0_24, %c0_25] : memref<2x8x32xf32, #tpu.memory_space<vmem>>, vector<1x8x32xf32>
    %22 = vector.shape_cast %21 : vector<1x8x32xf32> to vector<8x32xf32>
    %c0_26 = arith.constant 0 : index
    %c0_27 = arith.constant 0 : index
    %c0_28 = arith.constant 0 : index
    %23 = vector.load %arg12[%c0_26, %c0_27, %c0_28] : memref<2x8x32xf32, #tpu.memory_space<vmem>>, vector<1x8x32xf32>
    %24 = vector.shape_cast %23 : vector<1x8x32xf32> to vector<8x32xf32>
    %c1_29 = arith.constant 1 : index
    %c0_30 = arith.constant 0 : index
    %c0_31 = arith.constant 0 : index
    %25 = vector.load %arg12[%c1_29, %c0_30, %c0_31] : memref<2x8x32xf32, #tpu.memory_space<vmem>>, vector<1x8x32xf32>
    %26 = vector.shape_cast %25 : vector<1x8x32xf32> to vector<8x32xf32>
    %c4_i32 = arith.constant 4 : i32
    %27 = arith.muli %arg0, %c4_i32 : i32
    %c0_i32_32 = arith.constant 0 : i32
    %28 = arith.addi %27, %c0_i32_32 : i32
    %c7_i32 = arith.constant 7 : i32
    %29 = arith.subi %c7_i32, %28 : i32
    %30 = tpu.concatenate %20, %22 in 1 : vector<8x32xf32>, vector<8x32xf32> -> vector<8x64xf32>
    %31 = arith.truncf %30 : vector<8x64xf32> to vector<8x64xbf16>
    %cst_33 = arith.constant dense<0.000000e+00> : vector<8x256xf32>
    %32 = tpu.matmul %31, %18, %cst_33 {dimension_numbers = #tpu.dot_dimension_numbers<[1], [0], [0], [1], [0, 0, 1, 1], [], []>} : vector<8x64xbf16>, vector<64x256xbf16>, vector<8x256xf32> -> vector<8x256xf32>
    %c0_34 = arith.constant 0 : index
    %c0_35 = arith.constant 0 : index
    %33 = vector.load %arg13[%c0_34, %c0_35] : memref<32x128xf32, #tpu.memory_space<vmem>>, vector<8x128xf32>
    %34 = vector.extract_strided_slice %32 {offsets = [0, 0], sizes = [8, 128], strides = [1, 1]} : vector<8x256xf32> to vector<8x128xf32>
    %35 = arith.addf %33, %34 : vector<8x128xf32>
    %c24 = arith.constant 24 : index
    %c0_36 = arith.constant 0 : index
    %36 = vector.load %arg14[%c24, %c0_36] : memref<32x128xf32, #tpu.memory_space<vmem>>, vector<8x128xf32>
    %37 = vector.extract_strided_slice %32 {offsets = [0, 128], sizes = [8, 128], strides = [1, 1]} : vector<8x256xf32> to vector<8x128xf32>
    %38 = arith.addf %36, %37 : vector<8x128xf32>
    %39 = vector.extract_strided_slice %35 {offsets = [0, 0], sizes = [8, 96], strides = [1, 1]} : vector<8x128xf32> to vector<8x96xf32>
    %40 = arith.negf %39 : vector<8x96xf32>
    %41 = math.exp %40 : vector<8x96xf32>
    %cst_37 = arith.constant 1.000000e+00 : f32
    %42 = vector.broadcast %cst_37 : f32 to vector<8x96xf32>
    %43 = arith.addf %42, %41 : vector<8x96xf32>
    %44 = arith.divf %42, %43 : vector<8x96xf32>
    %45 = vector.extract_strided_slice %35 {offsets = [0, 96], sizes = [8, 32], strides = [1, 1]} : vector<8x128xf32> to vector<8x32xf32>
    %46 = math.tanh %45 : vector<8x32xf32>
    %47 = vector.extract_strided_slice %44 {offsets = [0, 32], sizes = [8, 32], strides = [1, 1]} : vector<8x96xf32> to vector<8x32xf32>
    %48 = arith.mulf %47, %24 : vector<8x32xf32>
    %49 = vector.extract_strided_slice %44 {offsets = [0, 0], sizes = [8, 32], strides = [1, 1]} : vector<8x96xf32> to vector<8x32xf32>
    %50 = arith.mulf %49, %46 : vector<8x32xf32>
    %51 = arith.addf %48, %50 : vector<8x32xf32>
    %52 = vector.extract_strided_slice %44 {offsets = [0, 64], sizes = [8, 32], strides = [1, 1]} : vector<8x96xf32> to vector<8x32xf32>
    %53 = math.tanh %51 : vector<8x32xf32>
    %54 = arith.mulf %52, %53 : vector<8x32xf32>
    %55 = vector.extract_strided_slice %38 {offsets = [0, 0], sizes = [8, 96], strides = [1, 1]} : vector<8x128xf32> to vector<8x96xf32>
    %56 = arith.negf %55 : vector<8x96xf32>
    %57 = math.exp %56 : vector<8x96xf32>
    %cst_38 = arith.constant 1.000000e+00 : f32
    %58 = vector.broadcast %cst_38 : f32 to vector<8x96xf32>
    %59 = arith.addf %58, %57 : vector<8x96xf32>
    %60 = arith.divf %58, %59 : vector<8x96xf32>
    %61 = vector.extract_strided_slice %38 {offsets = [0, 96], sizes = [8, 32], strides = [1, 1]} : vector<8x128xf32> to vector<8x32xf32>
    %62 = math.tanh %61 : vector<8x32xf32>
    %63 = vector.extract_strided_slice %60 {offsets = [0, 32], sizes = [8, 32], strides = [1, 1]} : vector<8x96xf32> to vector<8x32xf32>
    %64 = arith.mulf %63, %26 : vector<8x32xf32>
    %65 = vector.extract_strided_slice %60 {offsets = [0, 0], sizes = [8, 32], strides = [1, 1]} : vector<8x96xf32> to vector<8x32xf32>
    %66 = arith.mulf %65, %62 : vector<8x32xf32>
    %67 = arith.addf %64, %66 : vector<8x32xf32>
    %68 = vector.extract_strided_slice %60 {offsets = [0, 64], sizes = [8, 32], strides = [1, 1]} : vector<8x96xf32> to vector<8x32xf32>
    %69 = math.tanh %67 : vector<8x32xf32>
    %70 = arith.mulf %68, %69 : vector<8x32xf32>
    %71 = vector.broadcast %28 : i32 to vector<8x1xi32>
    %72 = arith.cmpi slt, %71, %17 : vector<8x1xi32>
    %73 = vector.broadcast %29 : i32 to vector<8x1xi32>
    %74 = arith.cmpi slt, %73, %17 : vector<8x1xi32>
    %cst_39 = arith.constant 0.000000e+00 : f32
    %75 = vector.shape_cast %72 : vector<8x1xi1> to vector<8x1xi1>
    %76 = vector.broadcast %75 : vector<8x1xi1> to vector<8x32xi1>
    %77 = vector.broadcast %cst_39 : f32 to vector<8x32xf32>
    %78 = arith.select %76, %54, %77 : vector<8x32xi1>, vector<8x32xf32>
    %c0_40 = arith.constant 0 : index
    %c0_41 = arith.constant 0 : index
    %79 = vector.load %arg9[%c0_40, %c0_41] : memref<32x32xf32, #tpu.memory_space<vmem>>, vector<8x32xf32>
    tpu.vector_store %arg9[%c0_40, %c0_41], %78 {strides = array<i32>} : memref<32x32xf32, #tpu.memory_space<vmem>>, vector<8x32xf32>,
    %cst_42 = arith.constant 0.000000e+00 : f32
    %80 = vector.shape_cast %74 : vector<8x1xi1> to vector<8x1xi1>
    %81 = vector.broadcast %80 : vector<8x1xi1> to vector<8x32xi1>
    %82 = vector.broadcast %cst_42 : f32 to vector<8x32xf32>
    %83 = arith.select %81, %70, %82 : vector<8x32xi1>, vector<8x32xf32>
    %c24_43 = arith.constant 24 : index
    %c0_44 = arith.constant 0 : index
    %84 = vector.load %arg10[%c24_43, %c0_44] : memref<32x32xf32, #tpu.memory_space<vmem>>, vector<8x32xf32>
    tpu.vector_store %arg10[%c24_43, %c0_44], %83 {strides = array<i32>} : memref<32x32xf32, #tpu.memory_space<vmem>>, vector<8x32xf32>,
    %85 = vector.shape_cast %72 : vector<8x1xi1> to vector<8x1xi1>
    %86 = vector.broadcast %85 : vector<8x1xi1> to vector<8x32xi1>
    %87 = arith.select %86, %54, %20 : vector<8x32xi1>, vector<8x32xf32>
    %88 = vector.shape_cast %72 : vector<8x1xi1> to vector<8x1xi1>
    %89 = vector.broadcast %88 : vector<8x1xi1> to vector<8x32xi1>
    %90 = arith.select %89, %51, %24 : vector<8x32xi1>, vector<8x32xf32>
    %91 = vector.shape_cast %74 : vector<8x1xi1> to vector<8x1xi1>
    %92 = vector.broadcast %91 : vector<8x1xi1> to vector<8x32xi1>
    %93 = arith.select %92, %70, %22 : vector<8x32xi1>, vector<8x32xf32>
    %94 = vector.shape_cast %74 : vector<8x1xi1> to vector<8x1xi1>
    %95 = vector.broadcast %94 : vector<8x1xi1> to vector<8x32xi1>
    %96 = arith.select %95, %67, %26 : vector<8x32xi1>, vector<8x32xf32>
    %c4_i32_45 = arith.constant 4 : i32
    %97 = arith.muli %arg0, %c4_i32_45 : i32
    %c1_i32 = arith.constant 1 : i32
    %98 = arith.addi %97, %c1_i32 : i32
    %c7_i32_46 = arith.constant 7 : i32
    %99 = arith.subi %c7_i32_46, %98 : i32
    %100 = tpu.concatenate %87, %93 in 1 : vector<8x32xf32>, vector<8x32xf32> -> vector<8x64xf32>
    %101 = arith.truncf %100 : vector<8x64xf32> to vector<8x64xbf16>
    %cst_47 = arith.constant dense<0.000000e+00> : vector<8x256xf32>
    %102 = tpu.matmul %101, %18, %cst_47 {dimension_numbers = #tpu.dot_dimension_numbers<[1], [0], [0], [1], [0, 0, 1, 1], [], []>} : vector<8x64xbf16>, vector<64x256xbf16>, vector<8x256xf32> -> vector<8x256xf32>
    %c8 = arith.constant 8 : index
    %c0_48 = arith.constant 0 : index
    %103 = vector.load %arg13[%c8, %c0_48] : memref<32x128xf32, #tpu.memory_space<vmem>>, vector<8x128xf32>
    %104 = vector.extract_strided_slice %102 {offsets = [0, 0], sizes = [8, 128], strides = [1, 1]} : vector<8x256xf32> to vector<8x128xf32>
    %105 = arith.addf %103, %104 : vector<8x128xf32>
    %c16 = arith.constant 16 : index
    %c0_49 = arith.constant 0 : index
    %106 = vector.load %arg14[%c16, %c0_49] : memref<32x128xf32, #tpu.memory_space<vmem>>, vector<8x128xf32>
    %107 = vector.extract_strided_slice %102 {offsets = [0, 128], sizes = [8, 128], strides = [1, 1]} : vector<8x256xf32> to vector<8x128xf32>
    %108 = arith.addf %106, %107 : vector<8x128xf32>
    %109 = vector.extract_strided_slice %105 {offsets = [0, 0], sizes = [8, 96], strides = [1, 1]} : vector<8x128xf32> to vector<8x96xf32>
    %110 = arith.negf %109 : vector<8x96xf32>
    %111 = math.exp %110 : vector<8x96xf32>
    %cst_50 = arith.constant 1.000000e+00 : f32
    %112 = vector.broadcast %cst_50 : f32 to vector<8x96xf32>
    %113 = arith.addf %112, %111 : vector<8x96xf32>
    %114 = arith.divf %112, %113 : vector<8x96xf32>
    %115 = vector.extract_strided_slice %105 {offsets = [0, 96], sizes = [8, 32], strides = [1, 1]} : vector<8x128xf32> to vector<8x32xf32>
    %116 = math.tanh %115 : vector<8x32xf32>
    %117 = vector.extract_strided_slice %114 {offsets = [0, 32], sizes = [8, 32], strides = [1, 1]} : vector<8x96xf32> to vector<8x32xf32>
    %118 = arith.mulf %117, %90 : vector<8x32xf32>
    %119 = vector.extract_strided_slice %114 {offsets = [0, 0], sizes = [8, 32], strides = [1, 1]} : vector<8x96xf32> to vector<8x32xf32>
    %120 = arith.mulf %119, %116 : vector<8x32xf32>
    %121 = arith.addf %118, %120 : vector<8x32xf32>
    %122 = vector.extract_strided_slice %114 {offsets = [0, 64], sizes = [8, 32], strides = [1, 1]} : vector<8x96xf32> to vector<8x32xf32>
    %123 = math.tanh %121 : vector<8x32xf32>
    %124 = arith.mulf %122, %123 : vector<8x32xf32>
    %125 = vector.extract_strided_slice %108 {offsets = [0, 0], sizes = [8, 96], strides = [1, 1]} : vector<8x128xf32> to vector<8x96xf32>
    %126 = arith.negf %125 : vector<8x96xf32>
    %127 = math.exp %126 : vector<8x96xf32>
    %cst_51 = arith.constant 1.000000e+00 : f32
    %128 = vector.broadcast %cst_51 : f32 to vector<8x96xf32>
    %129 = arith.addf %128, %127 : vector<8x96xf32>
    %130 = arith.divf %128, %129 : vector<8x96xf32>
    %131 = vector.extract_strided_slice %108 {offsets = [0, 96], sizes = [8, 32], strides = [1, 1]} : vector<8x128xf32> to vector<8x32xf32>
    %132 = math.tanh %131 : vector<8x32xf32>
    %133 = vector.extract_strided_slice %130 {offsets = [0, 32], sizes = [8, 32], strides = [1, 1]} : vector<8x96xf32> to vector<8x32xf32>
    %134 = arith.mulf %133, %96 : vector<8x32xf32>
    %135 = vector.extract_strided_slice %130 {offsets = [0, 0], sizes = [8, 32], strides = [1, 1]} : vector<8x96xf32> to vector<8x32xf32>
    %136 = arith.mulf %135, %132 : vector<8x32xf32>
    %137 = arith.addf %134, %136 : vector<8x32xf32>
    %138 = vector.extract_strided_slice %130 {offsets = [0, 64], sizes = [8, 32], strides = [1, 1]} : vector<8x96xf32> to vector<8x32xf32>
    %139 = math.tanh %137 : vector<8x32xf32>
    %140 = arith.mulf %138, %139 : vector<8x32xf32>
    %141 = vector.broadcast %98 : i32 to vector<8x1xi32>
    %142 = arith.cmpi slt, %141, %17 : vector<8x1xi32>
    %143 = vector.broadcast %99 : i32 to vector<8x1xi32>
    %144 = arith.cmpi slt, %143, %17 : vector<8x1xi32>
    %cst_52 = arith.constant 0.000000e+00 : f32
    %145 = vector.shape_cast %142 : vector<8x1xi1> to vector<8x1xi1>
    %146 = vector.broadcast %145 : vector<8x1xi1> to vector<8x32xi1>
    %147 = vector.broadcast %cst_52 : f32 to vector<8x32xf32>
    %148 = arith.select %146, %124, %147 : vector<8x32xi1>, vector<8x32xf32>
    %c8_53 = arith.constant 8 : index
    %c0_54 = arith.constant 0 : index
    %149 = vector.load %arg9[%c8_53, %c0_54] : memref<32x32xf32, #tpu.memory_space<vmem>>, vector<8x32xf32>
    tpu.vector_store %arg9[%c8_53, %c0_54], %148 {strides = array<i32>} : memref<32x32xf32, #tpu.memory_space<vmem>>, vector<8x32xf32>,
    %cst_55 = arith.constant 0.000000e+00 : f32
    %150 = vector.shape_cast %144 : vector<8x1xi1> to vector<8x1xi1>
    %151 = vector.broadcast %150 : vector<8x1xi1> to vector<8x32xi1>
    %152 = vector.broadcast %cst_55 : f32 to vector<8x32xf32>
    %153 = arith.select %151, %140, %152 : vector<8x32xi1>, vector<8x32xf32>
    %c16_56 = arith.constant 16 : index
    %c0_57 = arith.constant 0 : index
    %154 = vector.load %arg10[%c16_56, %c0_57] : memref<32x32xf32, #tpu.memory_space<vmem>>, vector<8x32xf32>
    tpu.vector_store %arg10[%c16_56, %c0_57], %153 {strides = array<i32>} : memref<32x32xf32, #tpu.memory_space<vmem>>, vector<8x32xf32>,
    %155 = vector.shape_cast %142 : vector<8x1xi1> to vector<8x1xi1>
    %156 = vector.broadcast %155 : vector<8x1xi1> to vector<8x32xi1>
    %157 = arith.select %156, %124, %87 : vector<8x32xi1>, vector<8x32xf32>
    %158 = vector.shape_cast %142 : vector<8x1xi1> to vector<8x1xi1>
    %159 = vector.broadcast %158 : vector<8x1xi1> to vector<8x32xi1>
    %160 = arith.select %159, %121, %90 : vector<8x32xi1>, vector<8x32xf32>
    %161 = vector.shape_cast %144 : vector<8x1xi1> to vector<8x1xi1>
    %162 = vector.broadcast %161 : vector<8x1xi1> to vector<8x32xi1>
    %163 = arith.select %162, %140, %93 : vector<8x32xi1>, vector<8x32xf32>
    %164 = vector.shape_cast %144 : vector<8x1xi1> to vector<8x1xi1>
    %165 = vector.broadcast %164 : vector<8x1xi1> to vector<8x32xi1>
    %166 = arith.select %165, %137, %96 : vector<8x32xi1>, vector<8x32xf32>
    %c4_i32_58 = arith.constant 4 : i32
    %167 = arith.muli %arg0, %c4_i32_58 : i32
    %c2_i32 = arith.constant 2 : i32
    %168 = arith.addi %167, %c2_i32 : i32
    %c7_i32_59 = arith.constant 7 : i32
    %169 = arith.subi %c7_i32_59, %168 : i32
    %170 = tpu.concatenate %157, %163 in 1 : vector<8x32xf32>, vector<8x32xf32> -> vector<8x64xf32>
    %171 = arith.truncf %170 : vector<8x64xf32> to vector<8x64xbf16>
    %cst_60 = arith.constant dense<0.000000e+00> : vector<8x256xf32>
    %172 = tpu.matmul %171, %18, %cst_60 {dimension_numbers = #tpu.dot_dimension_numbers<[1], [0], [0], [1], [0, 0, 1, 1], [], []>} : vector<8x64xbf16>, vector<64x256xbf16>, vector<8x256xf32> -> vector<8x256xf32>
    %c16_61 = arith.constant 16 : index
    %c0_62 = arith.constant 0 : index
    %173 = vector.load %arg13[%c16_61, %c0_62] : memref<32x128xf32, #tpu.memory_space<vmem>>, vector<8x128xf32>
    %174 = vector.extract_strided_slice %172 {offsets = [0, 0], sizes = [8, 128], strides = [1, 1]} : vector<8x256xf32> to vector<8x128xf32>
    %175 = arith.addf %173, %174 : vector<8x128xf32>
    %c8_63 = arith.constant 8 : index
    %c0_64 = arith.constant 0 : index
    %176 = vector.load %arg14[%c8_63, %c0_64] : memref<32x128xf32, #tpu.memory_space<vmem>>, vector<8x128xf32>
    %177 = vector.extract_strided_slice %172 {offsets = [0, 128], sizes = [8, 128], strides = [1, 1]} : vector<8x256xf32> to vector<8x128xf32>
    %178 = arith.addf %176, %177 : vector<8x128xf32>
    %179 = vector.extract_strided_slice %175 {offsets = [0, 0], sizes = [8, 96], strides = [1, 1]} : vector<8x128xf32> to vector<8x96xf32>
    %180 = arith.negf %179 : vector<8x96xf32>
    %181 = math.exp %180 : vector<8x96xf32>
    %cst_65 = arith.constant 1.000000e+00 : f32
    %182 = vector.broadcast %cst_65 : f32 to vector<8x96xf32>
    %183 = arith.addf %182, %181 : vector<8x96xf32>
    %184 = arith.divf %182, %183 : vector<8x96xf32>
    %185 = vector.extract_strided_slice %175 {offsets = [0, 96], sizes = [8, 32], strides = [1, 1]} : vector<8x128xf32> to vector<8x32xf32>
    %186 = math.tanh %185 : vector<8x32xf32>
    %187 = vector.extract_strided_slice %184 {offsets = [0, 32], sizes = [8, 32], strides = [1, 1]} : vector<8x96xf32> to vector<8x32xf32>
    %188 = arith.mulf %187, %160 : vector<8x32xf32>
    %189 = vector.extract_strided_slice %184 {offsets = [0, 0], sizes = [8, 32], strides = [1, 1]} : vector<8x96xf32> to vector<8x32xf32>
    %190 = arith.mulf %189, %186 : vector<8x32xf32>
    %191 = arith.addf %188, %190 : vector<8x32xf32>
    %192 = vector.extract_strided_slice %184 {offsets = [0, 64], sizes = [8, 32], strides = [1, 1]} : vector<8x96xf32> to vector<8x32xf32>
    %193 = math.tanh %191 : vector<8x32xf32>
    %194 = arith.mulf %192, %193 : vector<8x32xf32>
    %195 = vector.extract_strided_slice %178 {offsets = [0, 0], sizes = [8, 96], strides = [1, 1]} : vector<8x128xf32> to vector<8x96xf32>
    %196 = arith.negf %195 : vector<8x96xf32>
    %197 = math.exp %196 : vector<8x96xf32>
    %cst_66 = arith.constant 1.000000e+00 : f32
    %198 = vector.broadcast %cst_66 : f32 to vector<8x96xf32>
    %199 = arith.addf %198, %197 : vector<8x96xf32>
    %200 = arith.divf %198, %199 : vector<8x96xf32>
    %201 = vector.extract_strided_slice %178 {offsets = [0, 96], sizes = [8, 32], strides = [1, 1]} : vector<8x128xf32> to vector<8x32xf32>
    %202 = math.tanh %201 : vector<8x32xf32>
    %203 = vector.extract_strided_slice %200 {offsets = [0, 32], sizes = [8, 32], strides = [1, 1]} : vector<8x96xf32> to vector<8x32xf32>
    %204 = arith.mulf %203, %166 : vector<8x32xf32>
    %205 = vector.extract_strided_slice %200 {offsets = [0, 0], sizes = [8, 32], strides = [1, 1]} : vector<8x96xf32> to vector<8x32xf32>
    %206 = arith.mulf %205, %202 : vector<8x32xf32>
    %207 = arith.addf %204, %206 : vector<8x32xf32>
    %208 = vector.extract_strided_slice %200 {offsets = [0, 64], sizes = [8, 32], strides = [1, 1]} : vector<8x96xf32> to vector<8x32xf32>
    %209 = math.tanh %207 : vector<8x32xf32>
    %210 = arith.mulf %208, %209 : vector<8x32xf32>
    %211 = vector.broadcast %168 : i32 to vector<8x1xi32>
    %212 = arith.cmpi slt, %211, %17 : vector<8x1xi32>
    %213 = vector.broadcast %169 : i32 to vector<8x1xi32>
    %214 = arith.cmpi slt, %213, %17 : vector<8x1xi32>
    %cst_67 = arith.constant 0.000000e+00 : f32
    %215 = vector.shape_cast %212 : vector<8x1xi1> to vector<8x1xi1>
    %216 = vector.broadcast %215 : vector<8x1xi1> to vector<8x32xi1>
    %217 = vector.broadcast %cst_67 : f32 to vector<8x32xf32>
    %218 = arith.select %216, %194, %217 : vector<8x32xi1>, vector<8x32xf32>
    %c16_68 = arith.constant 16 : index
    %c0_69 = arith.constant 0 : index
    %219 = vector.load %arg9[%c16_68, %c0_69] : memref<32x32xf32, #tpu.memory_space<vmem>>, vector<8x32xf32>
    tpu.vector_store %arg9[%c16_68, %c0_69], %218 {strides = array<i32>} : memref<32x32xf32, #tpu.memory_space<vmem>>, vector<8x32xf32>,
    %cst_70 = arith.constant 0.000000e+00 : f32
    %220 = vector.shape_cast %214 : vector<8x1xi1> to vector<8x1xi1>
    %221 = vector.broadcast %220 : vector<8x1xi1> to vector<8x32xi1>
    %222 = vector.broadcast %cst_70 : f32 to vector<8x32xf32>
    %223 = arith.select %221, %210, %222 : vector<8x32xi1>, vector<8x32xf32>
    %c8_71 = arith.constant 8 : index
    %c0_72 = arith.constant 0 : index
    %224 = vector.load %arg10[%c8_71, %c0_72] : memref<32x32xf32, #tpu.memory_space<vmem>>, vector<8x32xf32>
    tpu.vector_store %arg10[%c8_71, %c0_72], %223 {strides = array<i32>} : memref<32x32xf32, #tpu.memory_space<vmem>>, vector<8x32xf32>,
    %225 = vector.shape_cast %212 : vector<8x1xi1> to vector<8x1xi1>
    %226 = vector.broadcast %225 : vector<8x1xi1> to vector<8x32xi1>
    %227 = arith.select %226, %194, %157 : vector<8x32xi1>, vector<8x32xf32>
    %228 = vector.shape_cast %212 : vector<8x1xi1> to vector<8x1xi1>
    %229 = vector.broadcast %228 : vector<8x1xi1> to vector<8x32xi1>
    %230 = arith.select %229, %191, %160 : vector<8x32xi1>, vector<8x32xf32>
    %231 = vector.shape_cast %214 : vector<8x1xi1> to vector<8x1xi1>
    %232 = vector.broadcast %231 : vector<8x1xi1> to vector<8x32xi1>
    %233 = arith.select %232, %210, %163 : vector<8x32xi1>, vector<8x32xf32>
    %234 = vector.shape_cast %214 : vector<8x1xi1> to vector<8x1xi1>
    %235 = vector.broadcast %234 : vector<8x1xi1> to vector<8x32xi1>
    %236 = arith.select %235, %207, %166 : vector<8x32xi1>, vector<8x32xf32>
    %c4_i32_73 = arith.constant 4 : i32
    %237 = arith.muli %arg0, %c4_i32_73 : i32
    %c3_i32 = arith.constant 3 : i32
    %238 = arith.addi %237, %c3_i32 : i32
    %c7_i32_74 = arith.constant 7 : i32
    %239 = arith.subi %c7_i32_74, %238 : i32
    %240 = tpu.concatenate %227, %233 in 1 : vector<8x32xf32>, vector<8x32xf32> -> vector<8x64xf32>
    %241 = arith.truncf %240 : vector<8x64xf32> to vector<8x64xbf16>
    %cst_75 = arith.constant dense<0.000000e+00> : vector<8x256xf32>
    %242 = tpu.matmul %241, %18, %cst_75 {dimension_numbers = #tpu.dot_dimension_numbers<[1], [0], [0], [1], [0, 0, 1, 1], [], []>} : vector<8x64xbf16>, vector<64x256xbf16>, vector<8x256xf32> -> vector<8x256xf32>
    %c24_76 = arith.constant 24 : index
    %c0_77 = arith.constant 0 : index
    %243 = vector.load %arg13[%c24_76, %c0_77] : memref<32x128xf32, #tpu.memory_space<vmem>>, vector<8x128xf32>
    %244 = vector.extract_strided_slice %242 {offsets = [0, 0], sizes = [8, 128], strides = [1, 1]} : vector<8x256xf32> to vector<8x128xf32>
    %245 = arith.addf %243, %244 : vector<8x128xf32>
    %c0_78 = arith.constant 0 : index
    %c0_79 = arith.constant 0 : index
    %246 = vector.load %arg14[%c0_78, %c0_79] : memref<32x128xf32, #tpu.memory_space<vmem>>, vector<8x128xf32>
    %247 = vector.extract_strided_slice %242 {offsets = [0, 128], sizes = [8, 128], strides = [1, 1]} : vector<8x256xf32> to vector<8x128xf32>
    %248 = arith.addf %246, %247 : vector<8x128xf32>
    %249 = vector.extract_strided_slice %245 {offsets = [0, 0], sizes = [8, 96], strides = [1, 1]} : vector<8x128xf32> to vector<8x96xf32>
    %250 = arith.negf %249 : vector<8x96xf32>
    %251 = math.exp %250 : vector<8x96xf32>
    %cst_80 = arith.constant 1.000000e+00 : f32
    %252 = vector.broadcast %cst_80 : f32 to vector<8x96xf32>
    %253 = arith.addf %252, %251 : vector<8x96xf32>
    %254 = arith.divf %252, %253 : vector<8x96xf32>
    %255 = vector.extract_strided_slice %245 {offsets = [0, 96], sizes = [8, 32], strides = [1, 1]} : vector<8x128xf32> to vector<8x32xf32>
    %256 = math.tanh %255 : vector<8x32xf32>
    %257 = vector.extract_strided_slice %254 {offsets = [0, 32], sizes = [8, 32], strides = [1, 1]} : vector<8x96xf32> to vector<8x32xf32>
    %258 = arith.mulf %257, %230 : vector<8x32xf32>
    %259 = vector.extract_strided_slice %254 {offsets = [0, 0], sizes = [8, 32], strides = [1, 1]} : vector<8x96xf32> to vector<8x32xf32>
    %260 = arith.mulf %259, %256 : vector<8x32xf32>
    %261 = arith.addf %258, %260 : vector<8x32xf32>
    %262 = vector.extract_strided_slice %254 {offsets = [0, 64], sizes = [8, 32], strides = [1, 1]} : vector<8x96xf32> to vector<8x32xf32>
    %263 = math.tanh %261 : vector<8x32xf32>
    %264 = arith.mulf %262, %263 : vector<8x32xf32>
    %265 = vector.extract_strided_slice %248 {offsets = [0, 0], sizes = [8, 96], strides = [1, 1]} : vector<8x128xf32> to vector<8x96xf32>
    %266 = arith.negf %265 : vector<8x96xf32>
    %267 = math.exp %266 : vector<8x96xf32>
    %cst_81 = arith.constant 1.000000e+00 : f32
    %268 = vector.broadcast %cst_81 : f32 to vector<8x96xf32>
    %269 = arith.addf %268, %267 : vector<8x96xf32>
    %270 = arith.divf %268, %269 : vector<8x96xf32>
    %271 = vector.extract_strided_slice %248 {offsets = [0, 96], sizes = [8, 32], strides = [1, 1]} : vector<8x128xf32> to vector<8x32xf32>
    %272 = math.tanh %271 : vector<8x32xf32>
    %273 = vector.extract_strided_slice %270 {offsets = [0, 32], sizes = [8, 32], strides = [1, 1]} : vector<8x96xf32> to vector<8x32xf32>
    %274 = arith.mulf %273, %236 : vector<8x32xf32>
    %275 = vector.extract_strided_slice %270 {offsets = [0, 0], sizes = [8, 32], strides = [1, 1]} : vector<8x96xf32> to vector<8x32xf32>
    %276 = arith.mulf %275, %272 : vector<8x32xf32>
    %277 = arith.addf %274, %276 : vector<8x32xf32>
    %278 = vector.extract_strided_slice %270 {offsets = [0, 64], sizes = [8, 32], strides = [1, 1]} : vector<8x96xf32> to vector<8x32xf32>
    %279 = math.tanh %277 : vector<8x32xf32>
    %280 = arith.mulf %278, %279 : vector<8x32xf32>
    %281 = vector.broadcast %238 : i32 to vector<8x1xi32>
    %282 = arith.cmpi slt, %281, %17 : vector<8x1xi32>
    %283 = vector.broadcast %239 : i32 to vector<8x1xi32>
    %284 = arith.cmpi slt, %283, %17 : vector<8x1xi32>
    %cst_82 = arith.constant 0.000000e+00 : f32
    %285 = vector.shape_cast %282 : vector<8x1xi1> to vector<8x1xi1>
    %286 = vector.broadcast %285 : vector<8x1xi1> to vector<8x32xi1>
    %287 = vector.broadcast %cst_82 : f32 to vector<8x32xf32>
    %288 = arith.select %286, %264, %287 : vector<8x32xi1>, vector<8x32xf32>
    %c24_83 = arith.constant 24 : index
    %c0_84 = arith.constant 0 : index
    %289 = vector.load %arg9[%c24_83, %c0_84] : memref<32x32xf32, #tpu.memory_space<vmem>>, vector<8x32xf32>
    tpu.vector_store %arg9[%c24_83, %c0_84], %288 {strides = array<i32>} : memref<32x32xf32, #tpu.memory_space<vmem>>, vector<8x32xf32>,
    %cst_85 = arith.constant 0.000000e+00 : f32
    %290 = vector.shape_cast %284 : vector<8x1xi1> to vector<8x1xi1>
    %291 = vector.broadcast %290 : vector<8x1xi1> to vector<8x32xi1>
    %292 = vector.broadcast %cst_85 : f32 to vector<8x32xf32>
    %293 = arith.select %291, %280, %292 : vector<8x32xi1>, vector<8x32xf32>
    %c0_86 = arith.constant 0 : index
    %c0_87 = arith.constant 0 : index
    %294 = vector.load %arg10[%c0_86, %c0_87] : memref<32x32xf32, #tpu.memory_space<vmem>>, vector<8x32xf32>
    tpu.vector_store %arg10[%c0_86, %c0_87], %293 {strides = array<i32>} : memref<32x32xf32, #tpu.memory_space<vmem>>, vector<8x32xf32>,
    %295 = vector.shape_cast %282 : vector<8x1xi1> to vector<8x1xi1>
    %296 = vector.broadcast %295 : vector<8x1xi1> to vector<8x32xi1>
    %297 = arith.select %296, %264, %227 : vector<8x32xi1>, vector<8x32xf32>
    %298 = vector.shape_cast %282 : vector<8x1xi1> to vector<8x1xi1>
    %299 = vector.broadcast %298 : vector<8x1xi1> to vector<8x32xi1>
    %300 = arith.select %299, %261, %230 : vector<8x32xi1>, vector<8x32xf32>
    %301 = vector.shape_cast %284 : vector<8x1xi1> to vector<8x1xi1>
    %302 = vector.broadcast %301 : vector<8x1xi1> to vector<8x32xi1>
    %303 = arith.select %302, %280, %233 : vector<8x32xi1>, vector<8x32xf32>
    %304 = vector.shape_cast %284 : vector<8x1xi1> to vector<8x1xi1>
    %305 = vector.broadcast %304 : vector<8x1xi1> to vector<8x32xi1>
    %306 = arith.select %305, %277, %236 : vector<8x32xi1>, vector<8x32xf32>
    %c0_88 = arith.constant 0 : index
    %c0_89 = arith.constant 0 : index
    %c0_90 = arith.constant 0 : index
    %307 = vector.load %arg11[%c0_88, %c0_89, %c0_90] : memref<2x8x32xf32, #tpu.memory_space<vmem>>, vector<1x8x32xf32>
    %308 = vector.shape_cast %307 : vector<1x8x32xf32> to vector<8x32xf32>
    %309 = vector.shape_cast %297 : vector<8x32xf32> to vector<1x8x32xf32>
    tpu.vector_store %arg11[%c0_88, %c0_89, %c0_90], %309 {strides = array<i32>} : memref<2x8x32xf32, #tpu.memory_space<vmem>>, vector<1x8x32xf32>,
    %c1_91 = arith.constant 1 : index
    %c0_92 = arith.constant 0 : index
    %c0_93 = arith.constant 0 : index
    %310 = vector.load %arg11[%c1_91, %c0_92, %c0_93] : memref<2x8x32xf32, #tpu.memory_space<vmem>>, vector<1x8x32xf32>
    %311 = vector.shape_cast %310 : vector<1x8x32xf32> to vector<8x32xf32>
    %312 = vector.shape_cast %303 : vector<8x32xf32> to vector<1x8x32xf32>
    tpu.vector_store %arg11[%c1_91, %c0_92, %c0_93], %312 {strides = array<i32>} : memref<2x8x32xf32, #tpu.memory_space<vmem>>, vector<1x8x32xf32>,
    %c0_94 = arith.constant 0 : index
    %c0_95 = arith.constant 0 : index
    %c0_96 = arith.constant 0 : index
    %313 = vector.load %arg12[%c0_94, %c0_95, %c0_96] : memref<2x8x32xf32, #tpu.memory_space<vmem>>, vector<1x8x32xf32>
    %314 = vector.shape_cast %313 : vector<1x8x32xf32> to vector<8x32xf32>
    %315 = vector.shape_cast %300 : vector<8x32xf32> to vector<1x8x32xf32>
    tpu.vector_store %arg12[%c0_94, %c0_95, %c0_96], %315 {strides = array<i32>} : memref<2x8x32xf32, #tpu.memory_space<vmem>>, vector<1x8x32xf32>,
    %c1_97 = arith.constant 1 : index
    %c0_98 = arith.constant 0 : index
    %c0_99 = arith.constant 0 : index
    %316 = vector.load %arg12[%c1_97, %c0_98, %c0_99] : memref<2x8x32xf32, #tpu.memory_space<vmem>>, vector<1x8x32xf32>
    %317 = vector.shape_cast %316 : vector<1x8x32xf32> to vector<8x32xf32>
    %318 = vector.shape_cast %306 : vector<8x32xf32> to vector<1x8x32xf32>
    tpu.vector_store %arg12[%c1_97, %c0_98, %c0_99], %318 {strides = array<i32>} : memref<2x8x32xf32, #tpu.memory_space<vmem>>, vector<1x8x32xf32>,
    return
  }
  func.func @transform_0(%arg0: i32) -> (i32, i32) {
    %c0_i32 = arith.constant 0 : i32
    %c0_i32_0 = arith.constant 0 : i32
    %c0_i32_1 = arith.constant 0 : i32
    return %c0_i32, %c0_i32_0 : i32, i32
  }
  func.func @transform_1(%arg0: i32) -> (i32, i32) {
    %c0_i32 = arith.constant 0 : i32
    %c0_i32_0 = arith.constant 0 : i32
    return %arg0, %c0_i32 : i32, i32
  }
  func.func @transform_2(%arg0: i32) -> (i32, i32) {
    %c1_i32 = arith.constant 1 : i32
    %0 = arith.subi %c1_i32, %arg0 : i32
    %c0_i32 = arith.constant 0 : i32
    %c0_i32_0 = arith.constant 0 : i32
    return %0, %c0_i32 : i32, i32
  }
  func.func @transform_3(%arg0: i32) -> (i32, i32) {
    %c0_i32 = arith.constant 0 : i32
    %c0_i32_0 = arith.constant 0 : i32
    %c0_i32_1 = arith.constant 0 : i32
    return %c0_i32, %c0_i32_0 : i32, i32
  }
  func.func @transform_4(%arg0: i32) -> (i32, i32) {
    %c0_i32 = arith.constant 0 : i32
    %c0_i32_0 = arith.constant 0 : i32
    %c0_i32_1 = arith.constant 0 : i32
    return %c0_i32, %c0_i32_0 : i32, i32
  }
  func.func @transform_5(%arg0: i32) -> (i32, i32) {
    %c0_i32 = arith.constant 0 : i32
    %c0_i32_0 = arith.constant 0 : i32
    %c0_i32_1 = arith.constant 0 : i32
    return %c0_i32, %c0_i32_0 : i32, i32
  }
  func.func @transform_6(%arg0: i32) -> (i32, i32) {
    %c0_i32 = arith.constant 0 : i32
    %c0_i32_0 = arith.constant 0 : i32
    %c0_i32_1 = arith.constant 0 : i32
    return %c0_i32, %c0_i32_0 : i32, i32
  }
  func.func @transform_7(%arg0: i32) -> (i32, i32) {
    %c0_i32 = arith.constant 0 : i32
    %c0_i32_0 = arith.constant 0 : i32
    %c0_i32_1 = arith.constant 0 : i32
    return %c0_i32, %c0_i32_0 : i32, i32
  }
  func.func @transform_8(%arg0: i32) -> (i32, i32) {
    %c0_i32 = arith.constant 0 : i32
    %c0_i32_0 = arith.constant 0 : i32
    return %arg0, %c0_i32 : i32, i32
  }
  func.func @transform_9(%arg0: i32) -> (i32, i32) {
    %c1_i32 = arith.constant 1 : i32
    %0 = arith.subi %c1_i32, %arg0 : i32
    %c0_i32 = arith.constant 0 : i32
    %c0_i32_0 = arith.constant 0 : i32
    return %0, %c0_i32 : i32, i32
  }
  func.func @transform_10(%arg0: i32) -> (i32, i32, i32) {
    %c0_i32 = arith.constant 0 : i32
    %c0_i32_0 = arith.constant 0 : i32
    %c0_i32_1 = arith.constant 0 : i32
    %c0_i32_2 = arith.constant 0 : i32
    return %c0_i32, %c0_i32_0, %c0_i32_1 : i32, i32, i32
  }
  func.func @transform_11(%arg0: i32) -> (i32, i32, i32) {
    %c0_i32 = arith.constant 0 : i32
    %c0_i32_0 = arith.constant 0 : i32
    %c0_i32_1 = arith.constant 0 : i32
    %c0_i32_2 = arith.constant 0 : i32
    return %c0_i32, %c0_i32_0, %c0_i32_1 : i32, i32, i32
  }
}

module attributes {stable_mosaic.version = 11 : i64} {
  func.func @layernorm_kernel(%arg0: i32, %arg1: memref<1x64xf32, #tpu.memory_space<vmem>>, %arg2: memref<1x64xf32, #tpu.memory_space<vmem>>, %arg3: memref<32x32xf32, #tpu.memory_space<vmem>>, %arg4: memref<32x32xf32, #tpu.memory_space<vmem>>, %arg5: memref<32x64xf32, #tpu.memory_space<vmem>>) attributes {dimension_semantics = [#tpu.dimension_semantics<parallel>], iteration_bounds = array<i64: 2>, scalar_prefetch = 0 : i64, scratch_operands = 0 : i64, tpu.core_type = #tpu.core_type<tc>, window_params = [{pipeline_mode = #tpu.pipeline_mode<synchronous>, transform_indices = @transform_0, window_bounds = array<i64: 1, 64>}, {pipeline_mode = #tpu.pipeline_mode<synchronous>, transform_indices = @transform_1, window_bounds = array<i64: 1, 64>}, {transform_indices = @transform_2, window_bounds = array<i64: 32, 32>}, {transform_indices = @transform_3, window_bounds = array<i64: 32, 32>}, {transform_indices = @transform_4, window_bounds = array<i64: 32, 64>}]} {
    %c0 = arith.constant 0 : index
    %c0_0 = arith.constant 0 : index
    %0 = vector.load %arg3[%c0, %c0_0] : memref<32x32xf32, #tpu.memory_space<vmem>>, vector<32x32xf32>
    %c0_1 = arith.constant 0 : index
    %c0_2 = arith.constant 0 : index
    %1 = vector.load %arg4[%c0_1, %c0_2] : memref<32x32xf32, #tpu.memory_space<vmem>>, vector<32x32xf32>
    %2 = tpu.concatenate %0, %1 in 1 : vector<32x32xf32>, vector<32x32xf32> -> vector<32x64xf32>
    %cst = arith.constant dense<0.000000e+00> : vector<32xf32>
    %3 = vector.multi_reduction <add>, %2, %cst [1] : vector<32x64xf32> to vector<32xf32>
    %4 = vector.shape_cast %3 : vector<32xf32> to vector<32x1xf32>
    %cst_3 = arith.constant 6.400000e+01 : f32
    %5 = vector.broadcast %cst_3 : f32 to vector<32x1xf32>
    %6 = arith.divf %4, %5 : vector<32x1xf32>
    %7 = arith.mulf %2, %2 : vector<32x64xf32>
    %cst_4 = arith.constant dense<0.000000e+00> : vector<32xf32>
    %8 = vector.multi_reduction <add>, %7, %cst_4 [1] : vector<32x64xf32> to vector<32xf32>
    %9 = vector.shape_cast %8 : vector<32xf32> to vector<32x1xf32>
    %cst_5 = arith.constant 6.400000e+01 : f32
    %10 = vector.broadcast %cst_5 : f32 to vector<32x1xf32>
    %11 = arith.divf %9, %10 : vector<32x1xf32>
    %12 = arith.mulf %6, %6 : vector<32x1xf32>
    %13 = arith.subf %11, %12 : vector<32x1xf32>
    %cst_6 = arith.constant 9.99999974E-6 : f32
    %14 = vector.broadcast %cst_6 : f32 to vector<32x1xf32>
    %15 = arith.addf %13, %14 : vector<32x1xf32>
    %16 = math.rsqrt %15 : vector<32x1xf32>
    %17 = vector.broadcast %6 : vector<32x1xf32> to vector<32x64xf32>
    %18 = arith.subf %2, %17 : vector<32x64xf32>
    %19 = vector.broadcast %16 : vector<32x1xf32> to vector<32x64xf32>
    %20 = arith.mulf %18, %19 : vector<32x64xf32>
    %c0_7 = arith.constant 0 : index
    %c0_8 = arith.constant 0 : index
    %21 = vector.load %arg1[%c0_7, %c0_8] : memref<1x64xf32, #tpu.memory_space<vmem>>, vector<1x64xf32>
    %22 = vector.broadcast %21 : vector<1x64xf32> to vector<32x64xf32>
    %23 = arith.mulf %20, %22 : vector<32x64xf32>
    %c0_9 = arith.constant 0 : index
    %c0_10 = arith.constant 0 : index
    %24 = vector.load %arg2[%c0_9, %c0_10] : memref<1x64xf32, #tpu.memory_space<vmem>>, vector<1x64xf32>
    %25 = vector.broadcast %24 : vector<1x64xf32> to vector<32x64xf32>
    %26 = arith.addf %23, %25 : vector<32x64xf32>
    %c0_11 = arith.constant 0 : index
    %c0_12 = arith.constant 0 : index
    %27 = vector.load %arg5[%c0_11, %c0_12] : memref<32x64xf32, #tpu.memory_space<vmem>>, vector<32x64xf32>
    tpu.vector_store %arg5[%c0_11, %c0_12], %26 {strides = array<i32>} : memref<32x64xf32, #tpu.memory_space<vmem>>, vector<32x64xf32>,
    return
  }
  func.func @transform_0(%arg0: i32) -> (i32, i32) {
    %c0_i32 = arith.constant 0 : i32
    %c0_i32_0 = arith.constant 0 : i32
    %c0_i32_1 = arith.constant 0 : i32
    return %c0_i32, %c0_i32_0 : i32, i32
  }
  func.func @transform_1(%arg0: i32) -> (i32, i32) {
    %c0_i32 = arith.constant 0 : i32
    %c0_i32_0 = arith.constant 0 : i32
    %c0_i32_1 = arith.constant 0 : i32
    return %c0_i32, %c0_i32_0 : i32, i32
  }
  func.func @transform_2(%arg0: i32) -> (i32, i32) {
    %c0_i32 = arith.constant 0 : i32
    %c0_i32_0 = arith.constant 0 : i32
    return %arg0, %c0_i32 : i32, i32
  }
  func.func @transform_3(%arg0: i32) -> (i32, i32) {
    %c0_i32 = arith.constant 0 : i32
    %c0_i32_0 = arith.constant 0 : i32
    return %arg0, %c0_i32 : i32, i32
  }
  func.func @transform_4(%arg0: i32) -> (i32, i32) {
    %c0_i32 = arith.constant 0 : i32
    %c0_i32_0 = arith.constant 0 : i32
    return %arg0, %c0_i32 : i32, i32
  }
}

</mosaic_0001>

<llo_original>
// kernel: encoder_forward.3
$region0: #{encoder_forward.3}
  #allocation0 [shape = 'u32[]', space=smem, size = 0x4, offset = 0x4, fixed_abs, tag = 'smem constant byte address 0x4 - core index']
  #allocation1 [shape = 'u32[144,128]{1,0:T(1,128)}', space=vmem, size = 0x12000, scoped, tag = 'internal scratch']
  %s0 = inlined_call_operand.vmem [shape: f32[1,64], index: 0, kind: input, shape index: {}]
  %s1 = inlined_call_operand.vmem [shape: f32[1,64], index: 1, kind: input, shape index: {}]
  %s2 = inlined_call_operand.vmem [shape: f32[64,32], index: 2, kind: input, shape index: {}]
  %s3 = inlined_call_operand.vmem [shape: f32[64,32], index: 3, kind: input, shape index: {}]
  %s4 = inlined_call_operand.vmem [shape: f32[64,64], index: 4, kind: output, shape index: {}]
  %s5 = sld [smem:[#allocation0]]
  $region49: #{encoder_forward.3} parent=0
    _
  %s7 = ssub.s32 1, %s5
  %s8 = scalar_select 0, %s7, %s5
  loop: start=0, step=1, limit=4
  $region2: #{encoder_forward.3} parent=0 // loop_pre_header
    _
  $region3: #{encoder_forward.3} parent=0 // loop_header
    %s10 = sphi 0, %s14
    %p11 = scmp.ge.s32.totalorder %s10, 4
    %s18 = sphi 0, %s18
    %s20 = sphi 0, %s18
    %s21 = sphi 0, %s20
    %s35 = sphi 0, %s21
    %s39 = sphi 0, %s39
    %s41 = sphi 0, %s39
    %s42 = sphi 0, %s41
    %s56 = sphi 0, %s42
    %s62 = sphi 0, %s64
    %s65 = sphi 0, %s62
    %s66 = sphi 0, %s65
    %s82 = sphi 0, %s66
    %s88 = sphi 0, %s90
    %s91 = sphi 0, %s88
    %s92 = sphi 0, %s91
    %s108 = sphi 0, %s92
    %s114 = sphi 0, %s116
    %s117 = sphi 0, %s114
    %s118 = sphi 0, %s117
    %s134 = sphi 0, %s118
  $region4: #{encoder_forward.3} parent=0 // loop_header_branch
    %13 = sbr.rel (%p11) target = $region8
  $region5: #{encoder_forward.3} parent=0 // loop_body
    %s15 = ssub.s32 %s10, 1
    %s16 = ssub.s32 %s10, 2
    %s17 = sadd.s32 %s10, 1
    %s19 = sadd.s32 %s18, 1
    %p22 = scmp.eq.s32.totalorder %s10, 1
    %p23 = scmp.ne.s32.totalorder %s18, %s20
    %p24 = scmp.eq.s32.totalorder %s10, 0
    %p25 = por %p23, %p24
    %p26 = scmp.ne.s32.totalorder %s18, %s20
    %p27 = scmp.eq.s32.totalorder %s15, 1
    %p28 = por %p26, %p27
    %p29 = scmp.ne.s32.totalorder %s20, %s21
    %p30 = scmp.eq.s32.totalorder %s15, 0
    %p31 = por %p29, %p30
    %p32 = scmp.ne.s32.totalorder %s20, %s21
    %p33 = scmp.eq.s32.totalorder %s16, 1
    %p34 = por %p32, %p33
    %p36 = scmp.ne.s32.totalorder %s21, %s35
    %p37 = scmp.eq.s32.totalorder %s16, 0
    %p38 = por %p36, %p37
    %s40 = sadd.s32 %s39, 1
    %p43 = scmp.eq.s32.totalorder %s10, 1
    %p44 = scmp.ne.s32.totalorder %s39, %s41
    %p45 = scmp.eq.s32.totalorder %s10, 0
    %p46 = por %p44, %p45
    %p47 = scmp.ne.s32.totalorder %s39, %s41
    %p48 = scmp.eq.s32.totalorder %s15, 1
    %p49 = por %p47, %p48
    %p50 = scmp.ne.s32.totalorder %s41, %s42
    %p51 = scmp.eq.s32.totalorder %s15, 0
    %p52 = por %p50, %p51
    %p53 = scmp.ne.s32.totalorder %s41, %s42
    %p54 = scmp.eq.s32.totalorder %s16, 1
    %p55 = por %p53, %p54
    %p57 = scmp.ne.s32.totalorder %s42, %s56
    %p58 = scmp.eq.s32.totalorder %s16, 0
    %p59 = por %p57, %p58
    %s60 = ssub.s32 %s10, %s17
    %p61 = scmp.eq.s32.totalorder %s60, 0
    %s63 = sadd.s32 %s62, 1
    %s64 = scalar_select %p61, %s62, %s63
    %p67 = pneg %p61
    %p68 = scmp.eq.s32.totalorder %s10, 1
    %p69 = por %p67, %p68
    %p70 = scmp.ne.s32.totalorder %s62, %s65
    %p71 = scmp.eq.s32.totalorder %s10, 0
    %p72 = por %p70, %p71
    %p73 = scmp.ne.s32.totalorder %s62, %s65
    %p74 = scmp.eq.s32.totalorder %s15, 1
    %p75 = por %p73, %p74
    %p76 = scmp.ne.s32.totalorder %s65, %s66
    %p77 = scmp.eq.s32.totalorder %s15, 0
    %p78 = por %p76, %p77
    %p79 = scmp.ne.s32.totalorder %s65, %s66
    %p80 = scmp.eq.s32.totalorder %s16, 1
    %p81 = por %p79, %p80
    %p83 = scmp.ne.s32.totalorder %s66, %s82
    %p84 = scmp.eq.s32.totalorder %s16, 0
    %p85 = por %p83, %p84
    %s86 = ssub.s32 %s10, %s17
    %p87 = scmp.eq.s32.totalorder %s86, 0
    %s89 = sadd.s32 %s88, 1
    %s90 = scalar_select %p87, %s88, %s89
    %p93 = pneg %p87
    %p94 = scmp.eq.s32.totalorder %s10, 1
    %p95 = por %p93, %p94
    %p96 = scmp.ne.s32.totalorder %s88, %s91
    %p97 = scmp.eq.s32.totalorder %s10, 0
    %p98 = por %p96, %p97
    %p99 = scmp.ne.s32.totalorder %s88, %s91
    %p100 = scmp.eq.s32.totalorder %s15, 1
    %p101 = por %p99, %p100
    %p102 = scmp.ne.s32.totalorder %s91, %s92
    %p103 = scmp.eq.s32.totalorder %s15, 0
    %p104 = por %p102, %p103
    %p105 = scmp.ne.s32.totalorder %s91, %s92
    %p106 = scmp.eq.s32.totalorder %s16, 1
    %p107 = por %p105, %p106
    %p109 = scmp.ne.s32.totalorder %s92, %s108
    %p110 = scmp.eq.s32.totalorder %s16, 0
    %p111 = por %p109, %p110
    %s112 = ssub.s32 %s10, %s17
    %p113 = scmp.eq.s32.totalorder %s112, 0
    %s115 = sadd.s32 %s114, 1
    %s116 = scalar_select %p113, %s114, %s115
    %p119 = pneg %p113
    %p120 = scmp.eq.s32.totalorder %s10, 1
    %p121 = por %p119, %p120
    %p122 = scmp.ne.s32.totalorder %s114, %s117
    %p123 = scmp.eq.s32.totalorder %s10, 0
    %p124 = por %p122, %p123
    %p125 = scmp.ne.s32.totalorder %s114, %s117
    %p126 = scmp.eq.s32.totalorder %s15, 1
    %p127 = por %p125, %p126
    %p128 = scmp.ne.s32.totalorder %s117, %s118
    %p129 = scmp.eq.s32.totalorder %s15, 0
    %p130 = por %p128, %p129
    %p131 = scmp.ne.s32.totalorder %s117, %s118
    %p132 = scmp.eq.s32.totalorder %s16, 1
    %p133 = por %p131, %p132
    %p135 = scmp.ne.s32.totalorder %s118, %s134
    %p136 = scmp.eq.s32.totalorder %s16, 0
    %p137 = por %p135, %p136
    %p138 = scmp.le.s32.totalorder 1, %s10
    %p139 = scmp.lt.s32.totalorder %s10, 3
    %p140 = pnand %p138, %p139
    %p141 = pneg %p140
    // Predicated region
    $region9: #{encoder_forward.3} parent=5 // pred_check
      _
    $region10: #{encoder_forward.3} parent=5 // pred_check_branch
      %143 = sbr.rel (%p140) target = $region12
    $region11: #{encoder_forward.3} parent=5 // pred_region
      %s144 = ssub.s32 %s10, 1
      // Predicated region
      $region13: #{encoder_forward.3} parent=11 // pred_check
        %p145 = pneg %p31
      $region14: #{encoder_forward.3} parent=11 // pred_check_branch
        %147 = sbr.rel (%p145) target = $region16
      $region15: #{encoder_forward.3} parent=11 // pred_region
        _
      $region16: #{encoder_forward.3} parent=11 // pred_fallthru
        _
      // Predicated region
      $region17: #{encoder_forward.3} parent=11 // pred_check
        %p148 = pneg %p52
      $region18: #{encoder_forward.3} parent=11 // pred_check_branch
        %150 = sbr.rel (%p148) target = $region20
      $region19: #{encoder_forward.3} parent=11 // pred_region
        _
      $region20: #{encoder_forward.3} parent=11 // pred_fallthru
        _
    $region12: #{encoder_forward.3} parent=5 // pred_fallthru
      _
    %p151 = scmp.lt.s32.totalorder %s10, 2
    // Predicated region
    $region21: #{encoder_forward.3} parent=5 // pred_check
      %p152 = pneg %p151
    $region22: #{encoder_forward.3} parent=5 // pred_check_branch
      %154 = sbr.rel (%p152) target = $region24
    $region23: #{encoder_forward.3} parent=5 // pred_region
      // Predicated region
      $region25: #{encoder_forward.3} parent=23 // pred_check
        %p155 = pneg %p72
      $region26: #{encoder_forward.3} parent=23 // pred_check_branch
        %157 = sbr.rel (%p155) target = $region28
      $region27: #{encoder_forward.3} parent=23 // pred_region
        %s158 = smul.u32 4, %s10
        %p159 = scmp.lt.s32.totalorder %s158, 7
        %s160 = scalar_select %p159, %s158, 7
        %s161 = smul.addr %s160, 8
        %s162 = scalar_lea.vmem %s2, %s161
        %s163 = smul.u32 4, %s10
      $region28: #{encoder_forward.3} parent=23 // pred_fallthru
        _
      // Predicated region
      $region29: #{encoder_forward.3} parent=23 // pred_check
        %p164 = pneg %p98
      $region30: #{encoder_forward.3} parent=23 // pred_check_branch
        %166 = sbr.rel (%p164) target = $region32
      $region31: #{encoder_forward.3} parent=23 // pred_region
        %s167 = smul.u32 4, %s10
        %p168 = scmp.lt.s32.totalorder %s167, 7
        %s169 = scalar_select %p168, %s167, 7
        %s170 = smul.addr %s169, 8
        %s171 = scalar_lea.vmem %s3, %s170
        %s172 = smul.u32 4, %s10
      $region32: #{encoder_forward.3} parent=23 // pred_fallthru
        _
    $region24: #{encoder_forward.3} parent=5 // pred_fallthru
      _
    %p173 = scmp.le.s32.totalorder 1, %s10
    %p174 = scmp.lt.s32.totalorder %s10, 3
    %p175 = pnand %p173, %p174
    %p176 = pneg %p175
    // Predicated region
    $region33: #{encoder_forward.3} parent=5 // pred_check
      _
    $region34: #{encoder_forward.3} parent=5 // pred_check_branch
      %178 = sbr.rel (%p175) target = $region36
    $region35: #{encoder_forward.3} parent=5 // pred_region
      %s179 = ssub.s32 %s10, 1
      %p180 = pneg %p31
      %p181 = pneg %p28
      %p182 = pneg %p52
      %p183 = pneg %p49
      %s184 = smul.u32 4, %s15
      %p185 = scmp.lt.s32.totalorder %s184, 7
      %s186 = scalar_select %p185, %s184, 7
      %s187 = smul.addr %s186, 8
      %s188 = scalar_lea.vmem %s2, %s187
      %p189 = pneg %p78
      %p190 = pneg %p75
      %s191 = smul.u32 4, %s15
      %p192 = scmp.lt.s32.totalorder %s191, 7
      %s193 = scalar_select %p192, %s191, 7
      %s194 = smul.addr %s193, 8
      %s195 = scalar_lea.vmem %s3, %s194
      %p196 = pneg %p104
      %p197 = pneg %p101
      %p198 = pneg %p130
      %p199 = pneg %p127
      %s200 = smul.u32 4, %s15
      %p201 = scmp.lt.s32.totalorder %s200, 7
      %s202 = scalar_select %p201, %s200, 7
      %s203 = smul.addr %s202, 8
      %s204 = scalar_lea.vmem %s4, %s203
      %s205 = smul.u32 4, %s15
      %p206 = scmp.lt.s32.totalorder %s205, 7
      %s207 = scalar_select %p206, %s205, 7
      %s208 = smul.addr %s207, 8
      %s209 = scalar_lea.vmem %s2, %s208
      %s210 = smul.u32 4, %s15
      %s211 = smul.u32 4, %s15
      %p212 = scmp.lt.s32.totalorder %s211, 7
      %s213 = scalar_select %p212, %s211, 7
      %s214 = smul.addr %s213, 8
      %s215 = scalar_lea.vmem %s3, %s214
      %s216 = smul.u32 4, %s15
      %s217 = smul.u32 4, %s15
      %p218 = scmp.lt.s32.totalorder %s217, 7
      %s219 = scalar_select %p218, %s217, 7
      %s220 = smul.addr %s219, 8
      %s221 = scalar_lea.vmem %s4, %s220
      %s222 = smul.u32 4, %s15
      %v223 = vld [vmem:[%s209] sm:$0xff]
      %v224 = vld [vmem:[%s209 + $0x8] sm:$0xff]
      %v225 = vld [vmem:[%s209 + $0x10] sm:$0xff]
      %v226 = vld [vmem:[%s209 + $0x18] sm:$0xff]
      %v227 = vld [vmem:[%s215] sm:$0xff]
      %v228 = vld [vmem:[%s215 + $0x8] sm:$0xff]
      %v229 = vld [vmem:[%s215 + $0x10] sm:$0xff]
      %v230 = vld [vmem:[%s215 + $0x18] sm:$0xff]
      %235 = vrot.lane.b32.xlu0 %v227, 32
      %v236 = vpop.permute.xlu0 %235
      %237 = vrot.lane.b32.xlu0 %v228, 32
      %v238 = vpop.permute.xlu0 %237
      %239 = vrot.lane.b32.xlu0 %v229, 32
      %v240 = vpop.permute.xlu0 %239
      %241 = vrot.lane.b32.xlu0 %v230, 32
      %v242 = vpop.permute.xlu0 %241
      %vm247 = vcmask 261120
      %v248 = vsel %vm247, %v223, %v236
      %v249 = vsel %vm247, %v224, %v238
      %v250 = vsel %vm247, %v225, %v240
      %v251 = vsel %vm247, %v226, %v242
      %vm252 = vcmask 523264
      %v253 = vsel %vm252, %v248, 0.0
      %254 = vadd.xlane.f32.xlu0 %v253
      %v255 = vpop.xlane.xlu0 %254
      %v256 = vsel %vm252, %v249, 0.0
      %257 = vadd.xlane.f32.xlu0 %v256
      %v258 = vpop.xlane.xlu0 %257
      %v259 = vsel %vm252, %v250, 0.0
      %260 = vadd.xlane.f32.xlu0 %v259
      %v261 = vpop.xlane.xlu0 %260
      %v262 = vsel %vm252, %v251, 0.0
      %263 = vadd.xlane.f32.xlu0 %v262
      %v264 = vpop.xlane.xlu0 %263
      %v265 = vrcp.pop 64.0
      %v266 = vmul.f32 %v255, %v265
      %v267 = vmul.f32 %v258, %v265
      %v268 = vmul.f32 %v261, %v265
      %v269 = vmul.f32 %v264, %v265
      %v270 = vmul.f32 %v248, %v248
      %v271 = vmul.f32 %v249, %v249
      %v272 = vmul.f32 %v250, %v250
      %v273 = vmul.f32 %v251, %v251
      %v274 = vsel %vm252, %v270, 0.0
      %275 = vadd.xlane.f32.xlu0 %v274
      %v276 = vpop.xlane.xlu0 %275
      %v277 = vsel %vm252, %v271, 0.0
      %278 = vadd.xlane.f32.xlu0 %v277
      %v279 = vpop.xlane.xlu0 %278
      %v280 = vsel %vm252, %v272, 0.0
      %281 = vadd.xlane.f32.xlu0 %v280
      %v282 = vpop.xlane.xlu0 %281
      %v283 = vsel %vm252, %v273, 0.0
      %284 = vadd.xlane.f32.xlu0 %v283
      %v285 = vpop.xlane.xlu0 %284
      %v286 = vmul.f32 %v276, %v265
      %v287 = vmul.f32 %v279, %v265
      %v288 = vmul.f32 %v282, %v265
      %v289 = vmul.f32 %v285, %v265
      %v290 = vmul.f32 %v266, %v266
      %v291 = vmul.f32 %v267, %v267
      %v292 = vmul.f32 %v268, %v268
      %v293 = vmul.f32 %v269, %v269
      %v294 = vsub.f32 %v286, %v290
      %v295 = vsub.f32 %v287, %v291
      %v296 = vsub.f32 %v288, %v292
      %v297 = vsub.f32 %v289, %v293
      %v298 = vadd.f32 %v294, 1e-05
      %v299 = vadd.f32 %v295, 1e-05
      %v300 = vadd.f32 %v296, 1e-05
      %v301 = vadd.f32 %v297, 1e-05
      %v302 = vrsqrt.pop %v298
      %v303 = vrsqrt.pop %v299
      %v304 = vrsqrt.pop %v300
      %v305 = vrsqrt.pop %v301
      %v306 = vsub.f32 %v248, %v266
      %v307 = vsub.f32 %v249, %v267
      %v308 = vsub.f32 %v250, %v268
      %v309 = vsub.f32 %v251, %v269
      %v310 = vmul.f32 %v306, %v302
      %v311 = vmul.f32 %v307, %v303
      %v312 = vmul.f32 %v308, %v304
      %v313 = vmul.f32 %v309, %v305
      %v314 = vld [vmem:[%s0] sm:$0x1]
      %v316 = vlaneseq
      %v317 = vshrl.u32 %v316, 7
      %v318 = vsub.s32 0, %v317
      %v319 = vrot.slane %v314, %v318
      %v321 = vmul.f32 %v310, %v319
      %v322 = vmul.f32 %v311, %v319
      %v323 = vmul.f32 %v312, %v319
      %v324 = vmul.f32 %v313, %v319
      %v325 = vld [vmem:[%s1] sm:$0x1]
      %v327 = vlaneseq
      %v328 = vshrl.u32 %v327, 7
      %v329 = vsub.s32 0, %v328
      %v330 = vrot.slane %v325, %v329
      %v332 = vadd.f32 %v321, %v330
      %v333 = vadd.f32 %v322, %v330
      %v334 = vadd.f32 %v323, %v330
      %v335 = vadd.f32 %v324, %v330
      %336 = vst.msk [vmem:[%s221] sm:$0xff] %vm252, %v332
      %337 = vst.msk [vmem:[%s221 + $0x8] sm:$0xff] %vm252, %v333
      %338 = vst.msk [vmem:[%s221 + $0x10] sm:$0xff] %vm252, %v334
      %339 = vst.msk [vmem:[%s221 + $0x18] sm:$0xff] %vm252, %v335
      %s340 = smul.u32 4, %s15
      %p341 = scmp.lt.s32.totalorder %s340, 7
      %s342 = scalar_select %p341, %s340, 7
      %s343 = smul.addr %s342, 8
      %s344 = scalar_lea.vmem %s4, %s343
      // Predicated region
      $region37: #{encoder_forward.3} parent=35 // pred_check
        %p345 = pneg %p127
      $region38: #{encoder_forward.3} parent=35 // pred_check_branch
        %347 = sbr.rel (%p345) target = $region40
      $region39: #{encoder_forward.3} parent=35 // pred_region
        %s348 = smul.u32 4, %s15
      $region40: #{encoder_forward.3} parent=35 // pred_fallthru
        _
    $region36: #{encoder_forward.3} parent=5 // pred_fallthru
      _
    %p349 = scmp.le.s32.totalorder 2, %s10
    // Predicated region
    $region41: #{encoder_forward.3} parent=5 // pred_check
      %p350 = pneg %p349
    $region42: #{encoder_forward.3} parent=5 // pred_check_branch
      %352 = sbr.rel (%p350) target = $region44
    $region43: #{encoder_forward.3} parent=5 // pred_region
      %s353 = ssub.s32 %s10, 2
      // Predicated region
      $region45: #{encoder_forward.3} parent=43 // pred_check
        %p354 = pneg %p133
      $region46: #{encoder_forward.3} parent=43 // pred_check_branch
        %356 = sbr.rel (%p354) target = $region48
      $region47: #{encoder_forward.3} parent=43 // pred_region
        %s357 = smul.u32 4, %s16
        %p358 = scmp.lt.s32.totalorder %s357, 7
        %s359 = scalar_select %p358, %s357, 7
        %s360 = smul.addr %s359, 8
        %s361 = scalar_lea.vmem %s4, %s360
      $region48: #{encoder_forward.3} parent=43 // pred_fallthru
        _
    $region44: #{encoder_forward.3} parent=5 // pred_fallthru
      _
  $region6: #{encoder_forward.3} parent=0 // loop_footer
    %s14 = sadd.s32 1, %s10
  $region7: #{encoder_forward.3} parent=0 // loop_footer_branch
    %9 = sbr.rel target = $region3
  $region8: #{encoder_forward.3} parent=0 // loop_exit
    _

// kernel: encoder_forward.2
$region0: #{encoder_forward.2}
  #allocation0 [shape = 'u32[]', space=smem, size = 0x4, offset = 0x4, fixed_abs, tag = 'smem constant byte address 0x4 - core index']
  #allocation1 [shape = 'u32[144,128]{1,0:T(1,128)}', space=vmem, size = 0x12000, scoped, tag = 'internal scratch']
  #allocation2 [shape = 'f32[32,128]{1,0:T(8,128)}', space=vmem, size = 0x4000, scoped, tag = 'scratch operand']
  #allocation3 [shape = 'f32[32,128]{1,0:T(8,128)}', space=vmem, size = 0x4000, scoped, tag = 'scratch operand']
  %s0 = inlined_call_operand.vmem [shape: s32[8,1], index: 0, kind: input, shape index: {}]
  %s1 = inlined_call_operand.vmem [shape: bf16[64,32], index: 1, kind: input, shape index: {}, may-alias: {1,2}]
  %s2 = inlined_call_operand.vmem [shape: bf16[64,32], index: 2, kind: input, shape index: {}, may-alias: {1,2}]
  %s3 = inlined_call_operand.vmem [shape: bf16[32,128], index: 3, kind: input, shape index: {}]
  %s4 = inlined_call_operand.vmem [shape: bf16[32,128], index: 4, kind: input, shape index: {}]
  %s5 = inlined_call_operand.vmem [shape: f32[1,128], index: 5, kind: input, shape index: {}]
  %s6 = inlined_call_operand.vmem [shape: f32[1,128], index: 6, kind: input, shape index: {}]
  %s7 = inlined_call_operand.vmem [shape: bf16[64,256], index: 7, kind: input, shape index: {}]
  %s8 = inlined_call_operand.vmem [shape: f32[64,32], index: 8, kind: output, shape index: {0}]
  %s9 = inlined_call_operand.vmem [shape: f32[64,32], index: 9, kind: output, shape index: {1}]
  %s10 = inlined_call_operand.vmem [shape: f32[2,8,32], index: 10, kind: output, shape index: {2}]
  %s11 = inlined_call_operand.vmem [shape: f32[2,8,32], index: 11, kind: output, shape index: {3}]
  %12 = xla_tuple %s8, %s9, %s10, %s11
  %s13 = sld [smem:[#allocation0]]
  $region93: #{encoder_forward.2} parent=0
    _
  %s15 = ssub.s32 1, %s13
  %s16 = scalar_select 0, %s15, %s13
  loop: start=0, step=1, limit=4
  $region2: #{encoder_forward.2} parent=0 // loop_pre_header
    _
  $region3: #{encoder_forward.2} parent=0 // loop_header
    %s18 = sphi 0, %s22
    %p19 = scmp.ge.s32.totalorder %s18, 4
    %s26 = sphi 0, %s26
    %s28 = sphi 0, %s26
    %s29 = sphi 0, %s28
    %s43 = sphi 0, %s29
    %s49 = sphi 0, %s51
    %s52 = sphi 0, %s49
    %s53 = sphi 0, %s52
    %s69 = sphi 0, %s53
    %s77 = sphi 0, %s79
    %s80 = sphi 0, %s77
    %s81 = sphi 0, %s80
    %s97 = sphi 0, %s81
    %s101 = sphi 0, %s101
    %s103 = sphi 0, %s101
    %s104 = sphi 0, %s103
    %s118 = sphi 0, %s104
    %s122 = sphi 0, %s122
    %s124 = sphi 0, %s122
    %s125 = sphi 0, %s124
    %s139 = sphi 0, %s125
    %s143 = sphi 0, %s143
    %s145 = sphi 0, %s143
    %s146 = sphi 0, %s145
    %s160 = sphi 0, %s146
    %s164 = sphi 0, %s164
    %s166 = sphi 0, %s164
    %s167 = sphi 0, %s166
    %s181 = sphi 0, %s167
    %s185 = sphi 0, %s185
    %s187 = sphi 0, %s185
    %s188 = sphi 0, %s187
    %s202 = sphi 0, %s188
    %s208 = sphi 0, %s210
    %s211 = sphi 0, %s208
    %s212 = sphi 0, %s211
    %s228 = sphi 0, %s212
    %s236 = sphi 0, %s238
    %s239 = sphi 0, %s236
    %s240 = sphi 0, %s239
    %s256 = sphi 0, %s240
    %s260 = sphi 0, %s260
    %s262 = sphi 0, %s260
    %s263 = sphi 0, %s262
    %s277 = sphi 0, %s263
    %s281 = sphi 0, %s281
    %s283 = sphi 0, %s281
    %s284 = sphi 0, %s283
    %s298 = sphi 0, %s284
  $region4: #{encoder_forward.2} parent=0 // loop_header_branch
    %21 = sbr.rel (%p19) target = $region8
  $region5: #{encoder_forward.2} parent=0 // loop_body
    %s23 = ssub.s32 %s18, 1
    %s24 = ssub.s32 %s18, 2
    %s25 = sadd.s32 %s18, 1
    %s27 = sadd.s32 %s26, 1
    %p30 = scmp.eq.s32.totalorder %s18, 1
    %p31 = scmp.ne.s32.totalorder %s26, %s28
    %p32 = scmp.eq.s32.totalorder %s18, 0
    %p33 = por %p31, %p32
    %p34 = scmp.ne.s32.totalorder %s26, %s28
    %p35 = scmp.eq.s32.totalorder %s23, 1
    %p36 = por %p34, %p35
    %p37 = scmp.ne.s32.totalorder %s28, %s29
    %p38 = scmp.eq.s32.totalorder %s23, 0
    %p39 = por %p37, %p38
    %p40 = scmp.ne.s32.totalorder %s28, %s29
    %p41 = scmp.eq.s32.totalorder %s24, 1
    %p42 = por %p40, %p41
    %p44 = scmp.ne.s32.totalorder %s29, %s43
    %p45 = scmp.eq.s32.totalorder %s24, 0
    %p46 = por %p44, %p45
    %s47 = ssub.s32 %s18, %s25
    %p48 = scmp.eq.s32.totalorder %s47, 0
    %s50 = sadd.s32 %s49, 1
    %s51 = scalar_select %p48, %s49, %s50
    %p54 = pneg %p48
    %p55 = scmp.eq.s32.totalorder %s18, 1
    %p56 = por %p54, %p55
    %p57 = scmp.ne.s32.totalorder %s49, %s52
    %p58 = scmp.eq.s32.totalorder %s18, 0
    %p59 = por %p57, %p58
    %p60 = scmp.ne.s32.totalorder %s49, %s52
    %p61 = scmp.eq.s32.totalorder %s23, 1
    %p62 = por %p60, %p61
    %p63 = scmp.ne.s32.totalorder %s52, %s53
    %p64 = scmp.eq.s32.totalorder %s23, 0
    %p65 = por %p63, %p64
    %p66 = scmp.ne.s32.totalorder %s52, %s53
    %p67 = scmp.eq.s32.totalorder %s24, 1
    %p68 = por %p66, %p67
    %p70 = scmp.ne.s32.totalorder %s53, %s69
    %p71 = scmp.eq.s32.totalorder %s24, 0
    %p72 = por %p70, %p71
    %s73 = ssub.s32 1, %s18
    %s74 = ssub.s32 1, %s25
    %s75 = ssub.s32 %s73, %s74
    %p76 = scmp.eq.s32.totalorder %s75, 0
    %s78 = sadd.s32 %s77, 1
    %s79 = scalar_select %p76, %s77, %s78
    %p82 = pneg %p76
    %p83 = scmp.eq.s32.totalorder %s18, 1
    %p84 = por %p82, %p83
    %p85 = scmp.ne.s32.totalorder %s77, %s80
    %p86 = scmp.eq.s32.totalorder %s18, 0
    %p87 = por %p85, %p86
    %p88 = scmp.ne.s32.totalorder %s77, %s80
    %p89 = scmp.eq.s32.totalorder %s23, 1
    %p90 = por %p88, %p89
    %p91 = scmp.ne.s32.totalorder %s80, %s81
    %p92 = scmp.eq.s32.totalorder %s23, 0
    %p93 = por %p91, %p92
    %p94 = scmp.ne.s32.totalorder %s80, %s81
    %p95 = scmp.eq.s32.totalorder %s24, 1
    %p96 = por %p94, %p95
    %p98 = scmp.ne.s32.totalorder %s81, %s97
    %p99 = scmp.eq.s32.totalorder %s24, 0
    %p100 = por %p98, %p99
    %s102 = sadd.s32 %s101, 1
    %p105 = scmp.eq.s32.totalorder %s18, 1
    %p106 = scmp.ne.s32.totalorder %s101, %s103
    %p107 = scmp.eq.s32.totalorder %s18, 0
    %p108 = por %p106, %p107
    %p109 = scmp.ne.s32.totalorder %s101, %s103
    %p110 = scmp.eq.s32.totalorder %s23, 1
    %p111 = por %p109, %p110
    %p112 = scmp.ne.s32.totalorder %s103, %s104
    %p113 = scmp.eq.s32.totalorder %s23, 0
    %p114 = por %p112, %p113
    %p115 = scmp.ne.s32.totalorder %s103, %s104
    %p116 = scmp.eq.s32.totalorder %s24, 1
    %p117 = por %p115, %p116
    %p119 = scmp.ne.s32.totalorder %s104, %s118
    %p120 = scmp.eq.s32.totalorder %s24, 0
    %p121 = por %p119, %p120
    %s123 = sadd.s32 %s122, 1
    %p126 = scmp.eq.s32.totalorder %s18, 1
    %p127 = scmp.ne.s32.totalorder %s122, %s124
    %p128 = scmp.eq.s32.totalorder %s18, 0
    %p129 = por %p127, %p128
    %p130 = scmp.ne.s32.totalorder %s122, %s124
    %p131 = scmp.eq.s32.totalorder %s23, 1
    %p132 = por %p130, %p131
    %p133 = scmp.ne.s32.totalorder %s124, %s125
    %p134 = scmp.eq.s32.totalorder %s23, 0
    %p135 = por %p133, %p134
    %p136 = scmp.ne.s32.totalorder %s124, %s125
    %p137 = scmp.eq.s32.totalorder %s24, 1
    %p138 = por %p136, %p137
    %p140 = scmp.ne.s32.totalorder %s125, %s139
    %p141 = scmp.eq.s32.totalorder %s24, 0
    %p142 = por %p140, %p141
    %s144 = sadd.s32 %s143, 1
    %p147 = scmp.eq.s32.totalorder %s18, 1
    %p148 = scmp.ne.s32.totalorder %s143, %s145
    %p149 = scmp.eq.s32.totalorder %s18, 0
    %p150 = por %p148, %p149
    %p151 = scmp.ne.s32.totalorder %s143, %s145
    %p152 = scmp.eq.s32.totalorder %s23, 1
    %p153 = por %p151, %p152
    %p154 = scmp.ne.s32.totalorder %s145, %s146
    %p155 = scmp.eq.s32.totalorder %s23, 0
    %p156 = por %p154, %p155
    %p157 = scmp.ne.s32.totalorder %s145, %s146
    %p158 = scmp.eq.s32.totalorder %s24, 1
    %p159 = por %p157, %p158
    %p161 = scmp.ne.s32.totalorder %s146, %s160
    %p162 = scmp.eq.s32.totalorder %s24, 0
    %p163 = por %p161, %p162
    %s165 = sadd.s32 %s164, 1
    %p168 = scmp.eq.s32.totalorder %s18, 1
    %p169 = scmp.ne.s32.totalorder %s164, %s166
    %p170 = scmp.eq.s32.totalorder %s18, 0
    %p171 = por %p169, %p170
    %p172 = scmp.ne.s32.totalorder %s164, %s166
    %p173 = scmp.eq.s32.totalorder %s23, 1
    %p174 = por %p172, %p173
    %p175 = scmp.ne.s32.totalorder %s166, %s167
    %p176 = scmp.eq.s32.totalorder %s23, 0
    %p177 = por %p175, %p176
    %p178 = scmp.ne.s32.totalorder %s166, %s167
    %p179 = scmp.eq.s32.totalorder %s24, 1
    %p180 = por %p178, %p179
    %p182 = scmp.ne.s32.totalorder %s167, %s181
    %p183 = scmp.eq.s32.totalorder %s24, 0
    %p184 = por %p182, %p183
    %s186 = sadd.s32 %s185, 1
    %p189 = scmp.eq.s32.totalorder %s18, 1
    %p190 = scmp.ne.s32.totalorder %s185, %s187
    %p191 = scmp.eq.s32.totalorder %s18, 0
    %p192 = por %p190, %p191
    %p193 = scmp.ne.s32.totalorder %s185, %s187
    %p194 = scmp.eq.s32.totalorder %s23, 1
    %p195 = por %p193, %p194
    %p196 = scmp.ne.s32.totalorder %s187, %s188
    %p197 = scmp.eq.s32.totalorder %s23, 0
    %p198 = por %p196, %p197
    %p199 = scmp.ne.s32.totalorder %s187, %s188
    %p200 = scmp.eq.s32.totalorder %s24, 1
    %p201 = por %p199, %p200
    %p203 = scmp.ne.s32.totalorder %s188, %s202
    %p204 = scmp.eq.s32.totalorder %s24, 0
    %p205 = por %p203, %p204
    %s206 = ssub.s32 %s18, %s25
    %p207 = scmp.eq.s32.totalorder %s206, 0
    %s209 = sadd.s32 %s208, 1
    %s210 = scalar_select %p207, %s208, %s209
    %p213 = pneg %p207
    %p214 = scmp.eq.s32.totalorder %s18, 1
    %p215 = por %p213, %p214
    %p216 = scmp.ne.s32.totalorder %s208, %s211
    %p217 = scmp.eq.s32.totalorder %s18, 0
    %p218 = por %p216, %p217
    %p219 = scmp.ne.s32.totalorder %s208, %s211
    %p220 = scmp.eq.s32.totalorder %s23, 1
    %p221 = por %p219, %p220
    %p222 = scmp.ne.s32.totalorder %s211, %s212
    %p223 = scmp.eq.s32.totalorder %s23, 0
    %p224 = por %p222, %p223
    %p225 = scmp.ne.s32.totalorder %s211, %s212
    %p226 = scmp.eq.s32.totalorder %s24, 1
    %p227 = por %p225, %p226
    %p229 = scmp.ne.s32.totalorder %s212, %s228
    %p230 = scmp.eq.s32.totalorder %s24, 0
    %p231 = por %p229, %p230
    %s232 = ssub.s32 1, %s18
    %s233 = ssub.s32 1, %s25
    %s234 = ssub.s32 %s232, %s233
    %p235 = scmp.eq.s32.totalorder %s234, 0
    %s237 = sadd.s32 %s236, 1
    %s238 = scalar_select %p235, %s236, %s237
    %p241 = pneg %p235
    %p242 = scmp.eq.s32.totalorder %s18, 1
    %p243 = por %p241, %p242
    %p244 = scmp.ne.s32.totalorder %s236, %s239
    %p245 = scmp.eq.s32.totalorder %s18, 0
    %p246 = por %p244, %p245
    %p247 = scmp.ne.s32.totalorder %s236, %s239
    %p248 = scmp.eq.s32.totalorder %s23, 1
    %p249 = por %p247, %p248
    %p250 = scmp.ne.s32.totalorder %s239, %s240
    %p251 = scmp.eq.s32.totalorder %s23, 0
    %p252 = por %p250, %p251
    %p253 = scmp.ne.s32.totalorder %s239, %s240
    %p254 = scmp.eq.s32.totalorder %s24, 1
    %p255 = por %p253, %p254
    %p257 = scmp.ne.s32.totalorder %s240, %s256
    %p258 = scmp.eq.s32.totalorder %s24, 0
    %p259 = por %p257, %p258
    %s261 = sadd.s32 %s260, 1
    %p264 = scmp.eq.s32.totalorder %s18, 1
    %p265 = scmp.ne.s32.totalorder %s260, %s262
    %p266 = scmp.eq.s32.totalorder %s18, 0
    %p267 = por %p265, %p266
    %p268 = scmp.ne.s32.totalorder %s260, %s262
    %p269 = scmp.eq.s32.totalorder %s23, 1
    %p270 = por %p268, %p269
    %p271 = scmp.ne.s32.totalorder %s262, %s263
    %p272 = scmp.eq.s32.totalorder %s23, 0
    %p273 = por %p271, %p272
    %p274 = scmp.ne.s32.totalorder %s262, %s263
    %p275 = scmp.eq.s32.totalorder %s24, 1
    %p276 = por %p274, %p275
    %p278 = scmp.ne.s32.totalorder %s263, %s277
    %p279 = scmp.eq.s32.totalorder %s24, 0
    %p280 = por %p278, %p279
    %s282 = sadd.s32 %s281, 1
    %p285 = scmp.eq.s32.totalorder %s18, 1
    %p286 = scmp.ne.s32.totalorder %s281, %s283
    %p287 = scmp.eq.s32.totalorder %s18, 0
    %p288 = por %p286, %p287
    %p289 = scmp.ne.s32.totalorder %s281, %s283
    %p290 = scmp.eq.s32.totalorder %s23, 1
    %p291 = por %p289, %p290
    %p292 = scmp.ne.s32.totalorder %s283, %s284
    %p293 = scmp.eq.s32.totalorder %s23, 0
    %p294 = por %p292, %p293
    %p295 = scmp.ne.s32.totalorder %s283, %s284
    %p296 = scmp.eq.s32.totalorder %s24, 1
    %p297 = por %p295, %p296
    %p299 = scmp.ne.s32.totalorder %s284, %s298
    %p300 = scmp.eq.s32.totalorder %s24, 0
    %p301 = por %p299, %p300
    %p302 = scmp.le.s32.totalorder 1, %s18
    %p303 = scmp.lt.s32.totalorder %s18, 3
    %p304 = pnand %p302, %p303
    %p305 = pneg %p304
    // Predicated region
    $region9: #{encoder_forward.2} parent=5 // pred_check
      _
    $region10: #{encoder_forward.2} parent=5 // pred_check_branch
      %307 = sbr.rel (%p304) target = $region12
    $region11: #{encoder_forward.2} parent=5 // pred_region
      %s308 = ssub.s32 %s18, 1
      // Predicated region
      $region13: #{encoder_forward.2} parent=11 // pred_check
        %p309 = pneg %p39
      $region14: #{encoder_forward.2} parent=11 // pred_check_branch
        %311 = sbr.rel (%p309) target = $region16
      $region15: #{encoder_forward.2} parent=11 // pred_region
        _
      $region16: #{encoder_forward.2} parent=11 // pred_fallthru
        _
      // Predicated region
      $region17: #{encoder_forward.2} parent=11 // pred_check
        %p312 = pneg %p114
      $region18: #{encoder_forward.2} parent=11 // pred_check_branch
        %314 = sbr.rel (%p312) target = $region20
      $region19: #{encoder_forward.2} parent=11 // pred_region
        _
      $region20: #{encoder_forward.2} parent=11 // pred_fallthru
        _
      // Predicated region
      $region21: #{encoder_forward.2} parent=11 // pred_check
        %p315 = pneg %p135
      $region22: #{encoder_forward.2} parent=11 // pred_check_branch
        %317 = sbr.rel (%p315) target = $region24
      $region23: #{encoder_forward.2} parent=11 // pred_region
        _
      $region24: #{encoder_forward.2} parent=11 // pred_fallthru
        _
      // Predicated region
      $region25: #{encoder_forward.2} parent=11 // pred_check
        %p318 = pneg %p156
      $region26: #{encoder_forward.2} parent=11 // pred_check_branch
        %320 = sbr.rel (%p318) target = $region28
      $region27: #{encoder_forward.2} parent=11 // pred_region
        _
      $region28: #{encoder_forward.2} parent=11 // pred_fallthru
        _
      // Predicated region
      $region29: #{encoder_forward.2} parent=11 // pred_check
        %p321 = pneg %p177
      $region30: #{encoder_forward.2} parent=11 // pred_check_branch
        %323 = sbr.rel (%p321) target = $region32
      $region31: #{encoder_forward.2} parent=11 // pred_region
        _
      $region32: #{encoder_forward.2} parent=11 // pred_fallthru
        _
      // Predicated region
      $region33: #{encoder_forward.2} parent=11 // pred_check
        %p324 = pneg %p198
      $region34: #{encoder_forward.2} parent=11 // pred_check_branch
        %326 = sbr.rel (%p324) target = $region36
      $region35: #{encoder_forward.2} parent=11 // pred_region
        _
      $region36: #{encoder_forward.2} parent=11 // pred_fallthru
        _
    $region12: #{encoder_forward.2} parent=5 // pred_fallthru
      _
    %p327 = scmp.lt.s32.totalorder %s18, 2
    // Predicated region
    $region37: #{encoder_forward.2} parent=5 // pred_check
      %p328 = pneg %p327
    $region38: #{encoder_forward.2} parent=5 // pred_check_branch
      %330 = sbr.rel (%p328) target = $region40
    $region39: #{encoder_forward.2} parent=5 // pred_region
      // Predicated region
      $region41: #{encoder_forward.2} parent=39 // pred_check
        %p331 = pneg %p59
      $region42: #{encoder_forward.2} parent=39 // pred_check_branch
        %333 = sbr.rel (%p331) target = $region44
      $region43: #{encoder_forward.2} parent=39 // pred_region
        %s334 = smul.u32 4, %s18
        %p335 = scmp.lt.s32.totalorder %s334, 7
        %s336 = scalar_select %p335, %s334, 7
        %s337 = smul.addr %s336, 4
        %s338 = scalar_lea.vmem %s1, %s337
        %s339 = smul.u32 4, %s18
      $region44: #{encoder_forward.2} parent=39 // pred_fallthru
        _
      // Predicated region
      $region45: #{encoder_forward.2} parent=39 // pred_check
        %p340 = pneg %p87
      $region46: #{encoder_forward.2} parent=39 // pred_check_branch
        %342 = sbr.rel (%p340) target = $region48
      $region47: #{encoder_forward.2} parent=39 // pred_region
        %s343 = ssub.s32 1, %s18
        %s344 = smul.u32 4, %s343
        %p345 = scmp.lt.s32.totalorder %s344, 7
        %s346 = scalar_select %p345, %s344, 7
        %s347 = smul.addr %s346, 4
        %s348 = scalar_lea.vmem %s2, %s347
        %s349 = ssub.s32 1, %s18
        %s350 = smul.u32 4, %s349
      $region48: #{encoder_forward.2} parent=39 // pred_fallthru
        _
    $region40: #{encoder_forward.2} parent=5 // pred_fallthru
      _
    %p351 = scmp.le.s32.totalorder 1, %s18
    %p352 = scmp.lt.s32.totalorder %s18, 3
    %p353 = pnand %p351, %p352
    %p354 = pneg %p353
    // Predicated region
    $region49: #{encoder_forward.2} parent=5 // pred_check
      _
    $region50: #{encoder_forward.2} parent=5 // pred_check_branch
      %356 = sbr.rel (%p353) target = $region52
    $region51: #{encoder_forward.2} parent=5 // pred_region
      %s357 = ssub.s32 %s18, 1
      %p358 = pneg %p39
      %p359 = pneg %p36
      %s360 = smul.u32 4, %s23
      %p361 = scmp.lt.s32.totalorder %s360, 7
      %s362 = scalar_select %p361, %s360, 7
      %s363 = smul.addr %s362, 4
      %s364 = scalar_lea.vmem %s1, %s363
      %p365 = pneg %p65
      %p366 = pneg %p62
      %s367 = ssub.s32 1, %s23
      %s368 = smul.u32 4, %s367
      %p369 = scmp.lt.s32.totalorder %s368, 7
      %s370 = scalar_select %p369, %s368, 7
      %s371 = smul.addr %s370, 4
      %s372 = scalar_lea.vmem %s2, %s371
      %p373 = pneg %p93
      %p374 = pneg %p90
      %p375 = pneg %p114
      %p376 = pneg %p111
      %p377 = pneg %p135
      %p378 = pneg %p132
      %p379 = pneg %p156
      %p380 = pneg %p153
      %p381 = pneg %p177
      %p382 = pneg %p174
      %p383 = pneg %p198
      %p384 = pneg %p195
      %p385 = pneg %p224
      %p386 = pneg %p221
      %s387 = smul.u32 4, %s23
      %p388 = scmp.lt.s32.totalorder %s387, 7
      %s389 = scalar_select %p388, %s387, 7
      %s390 = smul.addr %s389, 8
      %s391 = scalar_lea.vmem %s8, %s390
      %p392 = pneg %p252
      %p393 = pneg %p249
      %s394 = ssub.s32 1, %s23
      %s395 = smul.u32 4, %s394
      %p396 = scmp.lt.s32.totalorder %s395, 7
      %s397 = scalar_select %p396, %s395, 7
      %s398 = smul.addr %s397, 8
      %s399 = scalar_lea.vmem %s9, %s398
      %p400 = pneg %p273
      %p401 = pneg %p270
      %p402 = pneg %p294
      %p403 = pneg %p291
      %s404 = smul.u32 4, %s23
      %p405 = scmp.lt.s32.totalorder %s404, 7
      %s406 = scalar_select %p405, %s404, 7
      %s407 = smul.addr %s406, 4
      %s408 = scalar_lea.vmem %s1, %s407
      %s409 = smul.u32 4, %s23
      %s410 = ssub.s32 1, %s23
      %s411 = smul.u32 4, %s410
      %p412 = scmp.lt.s32.totalorder %s411, 7
      %s413 = scalar_select %p412, %s411, 7
      %s414 = smul.addr %s413, 4
      %s415 = scalar_lea.vmem %s2, %s414
      %s416 = ssub.s32 1, %s23
      %s417 = smul.u32 4, %s416
      %s418 = smul.u32 4, %s23
      %p419 = scmp.lt.s32.totalorder %s418, 7
      %s420 = scalar_select %p419, %s418, 7
      %s421 = smul.addr %s420, 8
      %s422 = scalar_lea.vmem %s8, %s421
      %s423 = smul.u32 4, %s23
      %s424 = ssub.s32 1, %s23
      %s425 = smul.u32 4, %s424
      %p426 = scmp.lt.s32.totalorder %s425, 7
      %s427 = scalar_select %p426, %s425, 7
      %s428 = smul.addr %s427, 8
      %s429 = scalar_lea.vmem %s9, %s428
      %s430 = ssub.s32 1, %s23
      %s431 = smul.u32 4, %s430
      %p433 = scmp.eq.s32.totalorder %s23, 0
      // Predicated region
      $region53: #{encoder_forward.2} parent=51 // pred_check
        %p434 = pneg %p433
      $region54: #{encoder_forward.2} parent=51 // pred_check_branch
        %436 = sbr.rel (%p434) target = $region56
      $region55: #{encoder_forward.2} parent=51 // pred_region
        %vm437 = vcmask 261120
        %438 = vst.msk [vmem:[%s10] sm:$0xff] %vm437, 0.0
        %439 = vst.msk [vmem:[%s10 + $0x8] sm:$0xff] %vm437, 0.0
        %440 = vst.msk [vmem:[%s11] sm:$0xff] %vm437, 0.0
        %441 = vst.msk [vmem:[%s11 + $0x8] sm:$0xff] %vm437, 0.0
      $region56: #{encoder_forward.2} parent=51 // pred_fallthru
        _
      %v442 = vld [vmem:[%s408] sm:$0xf]
      %v443 = vld [vmem:[%s408 + $0x4] sm:$0xf]
      %v444 = vld [vmem:[%s408 + $0x8] sm:$0xf]
      %v445 = vld [vmem:[%s408 + $0xc] sm:$0xf]
      %v446 = vld [vmem:[%s3] sm:$0xf]
      %v447 = vld [vmem:[%s3 + $0x4] sm:$0xf]
      %v448 = vld [vmem:[%s3 + $0x8] sm:$0xf]
      %v449 = vld [vmem:[%s3 + $0xc] sm:$0xf]
      %v450 = vld [vmem:[%s5] sm:$0x1]
      %v452 = vlaneseq
      %v453 = vshrl.u32 %v452, 7
      %v454 = vsub.s32 0, %v453
      %v455 = vrot.slane %v450, %v454
      %v461 = vunpack.c.l.b16 %v442
      %v462 = vunpack.c.l.b16 %v443
      %v463 = vunpack.c.l.b16 %v444
      %v464 = vunpack.c.l.b16 %v445
      %v465 = vpack.c.b16 %v462, %v461
      %v466 = vpack.c.b16 %v464, %v463
      %v471 = vunpack.c.l.b16 %v446
      %v472 = vunpack.c.l.b16 %v447
      %v473 = vunpack.c.l.b16 %v448
      %v474 = vunpack.c.l.b16 %v449
      %v475 = vpack.c.b16 %v472, %v471
      %v476 = vpack.c.b16 %v474, %v473
      %vm479 = vcmask 261120
      %v481 = vsel %vm479, %v465, 0
      %v484 = vsel %vm479, %v466, 0
      %486 = vmatprep.subr.bf16.mxu0 0
      %487 = vmatpush1.bf16.msra.mxu0 0
      %488 = vmatprep.subr.bf16.mxu0 0
      %489 = vmatpush1.bf16.msra.mxu0 0
      %490 = vmatprep.subr.bf16.mxu0 0
      %491 = vmatpush1.bf16.msra.mxu0 0
      %492 = vmatprep.subr.bf16.mxu0 0
      %493 = vmatpush1.bf16.msra.mxu0 0
      %494 = vmatprep.subr.bf16.mxu0 0
      %495 = vmatpush1.bf16.msra.mxu0 0
      %496 = vmatprep.subr.bf16.mxu0 0
      %497 = vmatpush1.bf16.msra.mxu0 0
      %498 = vmatprep.subr.bf16.mxu0 0
      %499 = vmatpush1.bf16.msra.mxu0 %v476
      %500 = vmatprep.subr.bf16.mxu0 0
      %501 = vmatpush1.bf16.msra.mxu0 %v475
      %502 = vmatprep.subr.bf16.mxu0 0
      %503 = vmatpush2.bf16.msra.mxu0 0
      %504 = vmatprep.subr.bf16.mxu0 0
      %505 = vmatpush2.bf16.msra.mxu0 0
      %506 = vmatprep.subr.bf16.mxu0 0
      %507 = vmatpush2.bf16.msra.mxu0 0
      %508 = vmatprep.subr.bf16.mxu0 0
      %509 = vmatpush2.bf16.msra.mxu0 0
      %510 = vmatprep.subr.bf16.mxu0 0
      %511 = vmatpush2.bf16.msra.mxu0 0
      %512 = vmatprep.subr.bf16.mxu0 0
      %513 = vmatpush2.bf16.msra.mxu0 0
      %514 = vmatprep.subr.bf16.mxu0 0
      %515 = vmatpush2.bf16.msra.mxu0 0
      %516 = vmatprep.subr.bf16.mxu0 0
      %517 = vmatpush2.bf16.msra.mxu0 0
      %518 = vmatprep.mubr.bf16.mxu0 0
      %519 = vmatmul.mubr.bf16.gmra.mxu0 %v481
      %v520 = vpop.f32.mrf.mxu0
      %v521 = vadd.f32 %v455, %v520
      %v522 = vpop.f32.mrf.mxu0
      %v523 = vpop.f32.mrf.mxu0
      %v524 = vadd.f32 %v455, %v523
      %v525 = vpop.f32.mrf.mxu0
      %526 = vmatprep.mubr.bf16.mxu0 0
      %527 = vmatmul.mubr.bf16.gmra.mxu0 %v484
      %v528 = vpop.f32.mrf.mxu0
      %v529 = vadd.f32 %v455, %v528
      %v530 = vpop.f32.mrf.mxu0
      %v531 = vpop.f32.mrf.mxu0
      %v532 = vadd.f32 %v455, %v531
      %v533 = vpop.f32.mrf.mxu0
      %534 = vdwg.mxu0
      %535 = vst [vmem:[#allocation2] sm:$0xff] %v521
      %536 = vst [vmem:[#allocation2 + $0x8] sm:$0xff] %v524
      %537 = vst [vmem:[#allocation2 + $0x10] sm:$0xff] %v529
      %538 = vst [vmem:[#allocation2 + $0x18] sm:$0xff] %v532
      %v539 = vld [vmem:[%s415] sm:$0xf]
      %v540 = vld [vmem:[%s415 + $0x4] sm:$0xf]
      %v541 = vld [vmem:[%s415 + $0x8] sm:$0xf]
      %v542 = vld [vmem:[%s415 + $0xc] sm:$0xf]
      %v543 = vld [vmem:[%s4] sm:$0xf]
      %v544 = vld [vmem:[%s4 + $0x4] sm:$0xf]
      %v545 = vld [vmem:[%s4 + $0x8] sm:$0xf]
      %v546 = vld [vmem:[%s4 + $0xc] sm:$0xf]
      %v547 = vld [vmem:[%s6] sm:$0x1]
      %v549 = vlaneseq
      %v550 = vshrl.u32 %v549, 7
      %v551 = vsub.s32 0, %v550
      %v552 = vrot.slane %v547, %v551
      %v558 = vunpack.c.l.b16 %v539
      %v559 = vunpack.c.l.b16 %v540
      %v560 = vunpack.c.l.b16 %v541
      %v561 = vunpack.c.l.b16 %v542
      %v562 = vpack.c.b16 %v559, %v558
      %v563 = vpack.c.b16 %v561, %v560
      %v568 = vunpack.c.l.b16 %v543
      %v569 = vunpack.c.l.b16 %v544
      %v570 = vunpack.c.l.b16 %v545
      %v571 = vunpack.c.l.b16 %v546
      %v572 = vpack.c.b16 %v569, %v568
      %v573 = vpack.c.b16 %v571, %v570
      %v577 = vsel %vm479, %v562, 0
      %v580 = vsel %vm479, %v563, 0
      %582 = vmatprep.subr.bf16.mxu0 0
      %583 = vmatpush1.bf16.msra.mxu0 0
      %584 = vmatprep.subr.bf16.mxu0 0
      %585 = vmatpush1.bf16.msra.mxu0 0
      %586 = vmatprep.subr.bf16.mxu0 0
      %587 = vmatpush1.bf16.msra.mxu0 0
      %588 = vmatprep.subr.bf16.mxu0 0
      %589 = vmatpush1.bf16.msra.mxu0 0
      %590 = vmatprep.subr.bf16.mxu0 0
      %591 = vmatpush1.bf16.msra.mxu0 0
      %592 = vmatprep.subr.bf16.mxu0 0
      %593 = vmatpush1.bf16.msra.mxu0 0
      %594 = vmatprep.subr.bf16.mxu0 0
      %595 = vmatpush1.bf16.msra.mxu0 %v573
      %596 = vmatprep.subr.bf16.mxu0 0
      %597 = vmatpush1.bf16.msra.mxu0 %v572
      %598 = vmatprep.subr.bf16.mxu0 0
      %599 = vmatpush2.bf16.msra.mxu0 0
      %600 = vmatprep.subr.bf16.mxu0 0
      %601 = vmatpush2.bf16.msra.mxu0 0
      %602 = vmatprep.subr.bf16.mxu0 0
      %603 = vmatpush2.bf16.msra.mxu0 0
      %604 = vmatprep.subr.bf16.mxu0 0
      %605 = vmatpush2.bf16.msra.mxu0 0
      %606 = vmatprep.subr.bf16.mxu0 0
      %607 = vmatpush2.bf16.msra.mxu0 0
      %608 = vmatprep.subr.bf16.mxu0 0
      %609 = vmatpush2.bf16.msra.mxu0 0
      %610 = vmatprep.subr.bf16.mxu0 0
      %611 = vmatpush2.bf16.msra.mxu0 0
      %612 = vmatprep.subr.bf16.mxu0 0
      %613 = vmatpush2.bf16.msra.mxu0 0
      %614 = vmatprep.mubr.bf16.mxu0 0
      %615 = vmatmul.mubr.bf16.gmra.mxu0 %v577
      %v616 = vpop.f32.mrf.mxu0
      %v617 = vadd.f32 %v552, %v616
      %v618 = vpop.f32.mrf.mxu0
      %v619 = vpop.f32.mrf.mxu0
      %v620 = vadd.f32 %v552, %v619
      %v621 = vpop.f32.mrf.mxu0
      %622 = vmatprep.mubr.bf16.mxu0 0
      %623 = vmatmul.mubr.bf16.gmra.mxu0 %v580
      %v624 = vpop.f32.mrf.mxu0
      %v625 = vadd.f32 %v552, %v624
      %v626 = vpop.f32.mrf.mxu0
      %v627 = vpop.f32.mrf.mxu0
      %v628 = vadd.f32 %v552, %v627
      %v629 = vpop.f32.mrf.mxu0
      %630 = vdwg.mxu0
      %631 = vst [vmem:[#allocation3] sm:$0xff] %v617
      %632 = vst [vmem:[#allocation3 + $0x8] sm:$0xff] %v620
      %633 = vst [vmem:[#allocation3 + $0x10] sm:$0xff] %v625
      %634 = vst [vmem:[#allocation3 + $0x18] sm:$0xff] %v628
      %v635 = vld [vmem:[%s0] sm:$0xff]
      %v636 = vld [vmem:[%s7] sm:$0xff]
      %v637 = vld [vmem:[%s7 + $0x8] sm:$0xff]
      %v638 = vld [vmem:[%s7 + $0x10] sm:$0xff]
      %v639 = vld [vmem:[%s7 + $0x18] sm:$0xff]
      %v640 = vld [vmem:[%s7 + $0x20] sm:$0xff]
      %v641 = vld [vmem:[%s7 + $0x28] sm:$0xff]
      %v642 = vld [vmem:[%s7 + $0x30] sm:$0xff]
      %v643 = vld [vmem:[%s7 + $0x38] sm:$0xff]
      %v644 = vld [vmem:[%s10] sm:$0xff]
      %s645 = scalar_lea.vmem %s10, 8
      %v646 = vld [vmem:[%s645] sm:$0xff]
      %v647 = vld [vmem:[%s11] sm:$0xff]
      %s648 = scalar_lea.vmem %s11, 8
      %v649 = vld [vmem:[%s648] sm:$0xff]
      %s650 = smul.u32 %s23, 4
      %s651 = ssub.s32 7, %s650
      %653 = vrot.lane.b32.xlu0 %v646, 32
      %v654 = vpop.permute.xlu0 %653
      %v656 = vsel %vm479, %v644, %v654
      %v657 = vpack.c.bf16 %v656, %v656
      %v666 = vunpack.c.l.b16 %v636
      %v667 = vunpack.c.h.b16 %v636
      %v668 = vunpack.c.l.b16 %v637
      %v669 = vunpack.c.h.b16 %v637
      %v670 = vunpack.c.l.b16 %v638
      %v671 = vunpack.c.h.b16 %v638
      %v672 = vunpack.c.l.b16 %v639
      %v673 = vunpack.c.h.b16 %v639
      %v674 = vunpack.c.l.b16 %v640
      %v675 = vunpack.c.h.b16 %v640
      %v676 = vunpack.c.l.b16 %v641
      %v677 = vunpack.c.h.b16 %v641
      %v678 = vunpack.c.l.b16 %v642
      %v679 = vunpack.c.h.b16 %v642
      %v680 = vunpack.c.l.b16 %v643
      %v681 = vunpack.c.h.b16 %v643
      %v682 = vpack.c.b16 %v668, %v666
      %v683 = vpack.c.b16 %v669, %v667
      %v684 = vpack.c.b16 %v672, %v670
      %v685 = vpack.c.b16 %v673, %v671
      %v686 = vpack.c.b16 %v676, %v674
      %v687 = vpack.c.b16 %v677, %v675
      %v688 = vpack.c.b16 %v680, %v678
      %v689 = vpack.c.b16 %v681, %v679
      %vm698 = vcmask 523264
      %v700 = vsel %vm698, %v657, 0
      %702 = vmatprep.subr.bf16.mxu0 0
      %703 = vmatpush1.bf16.msra.mxu0 0
      %704 = vmatprep.subr.bf16.mxu0 0
      %705 = vmatpush1.bf16.msra.mxu0 0
      %706 = vmatprep.subr.bf16.mxu0 0
      %707 = vmatpush1.bf16.msra.mxu0 0
      %708 = vmatprep.subr.bf16.mxu0 0
      %709 = vmatpush1.bf16.msra.mxu0 0
      %710 = vmatprep.subr.bf16.mxu0 %v689
      %711 = vmatpush1.bf16.msra.mxu0 %v688
      %712 = vmatprep.subr.bf16.mxu0 %v687
      %713 = vmatpush1.bf16.msra.mxu0 %v686
      %714 = vmatprep.subr.bf16.mxu0 %v685
      %715 = vmatpush1.bf16.msra.mxu0 %v684
      %716 = vmatprep.subr.bf16.mxu0 %v683
      %717 = vmatpush1.bf16.msra.mxu0 %v682
      %718 = vmatprep.subr.bf16.mxu0 0
      %719 = vmatpush2.bf16.msra.mxu0 0
      %720 = vmatprep.subr.bf16.mxu0 0
      %721 = vmatpush2.bf16.msra.mxu0 0
      %722 = vmatprep.subr.bf16.mxu0 0
      %723 = vmatpush2.bf16.msra.mxu0 0
      %724 = vmatprep.subr.bf16.mxu0 0
      %725 = vmatpush2.bf16.msra.mxu0 0
      %726 = vmatprep.subr.bf16.mxu0 0
      %727 = vmatpush2.bf16.msra.mxu0 0
      %728 = vmatprep.subr.bf16.mxu0 0
      %729 = vmatpush2.bf16.msra.mxu0 0
      %730 = vmatprep.subr.bf16.mxu0 0
      %731 = vmatpush2.bf16.msra.mxu0 0
      %732 = vmatprep.subr.bf16.mxu0 0
      %733 = vmatpush2.bf16.msra.mxu0 0
      %734 = vmatprep.mubr.bf16.mxu0 0
      %735 = vmatmul.mubr.bf16.gmra.mxu0 %v700
      %v736 = vpop.f32.mrf.mxu0
      %v737 = vadd.f32 0.0, %v736
      %v738 = vpop.f32.mrf.mxu0
      %v739 = vadd.f32 0.0, %v738
      %v740 = vpop.f32.mrf.mxu0
      %v741 = vpop.f32.mrf.mxu0
      %742 = vdwg.mxu0
      %v743 = vld [vmem:[#allocation2] sm:$0xff]
      %v744 = vadd.f32 %v743, %v737
      %v745 = vld [vmem:[#allocation3 + $0x18] sm:$0xff]
      %v746 = vadd.f32 %v745, %v739
      %v747 = vxor.u32 %v744, 2147483648
      %v748 = vmul.f32 %v747, 1.442695
      %v749 = vpow.pop %v748
      %v750 = vadd.f32 %v749, 1.0
      %v751 = vrcp.pop %v750
      %v752 = vmul.f32 1.0, %v751
      %v753 = vtanh.pop %v744
      %755 = vrot.lane.b32.xlu0 %v647, 32
      %v756 = vpop.permute.xlu0 %755
      %v758 = vmul.f32 %v752, %v756
      %760 = vrot.lane.b32.xlu0 %v753, 32
      %v761 = vpop.permute.xlu0 %760
      %v763 = vmul.f32 %v752, %v761
      %765 = vrot.lane.b32.xlu0 %v763, 32
      %v766 = vpop.permute.xlu0 %765
      %v768 = vadd.f32 %v758, %v766
      %v769 = vtanh.pop %v768
      %771 = vrot.lane.b32.xlu0 %v769, 32
      %v772 = vpop.permute.xlu0 %771
      %v774 = vmul.f32 %v752, %v772
      %v775 = vxor.u32 %v746, 2147483648
      %v776 = vmul.f32 %v775, 1.442695
      %v777 = vpow.pop %v776
      %v778 = vadd.f32 %v777, 1.0
      %v779 = vrcp.pop %v778
      %v780 = vmul.f32 1.0, %v779
      %v781 = vtanh.pop %v746
      %783 = vrot.lane.b32.xlu0 %v649, 32
      %v784 = vpop.permute.xlu0 %783
      %v786 = vmul.f32 %v780, %v784
      %788 = vrot.lane.b32.xlu0 %v781, 32
      %v789 = vpop.permute.xlu0 %788
      %v791 = vmul.f32 %v780, %v789
      %793 = vrot.lane.b32.xlu0 %v791, 32
      %v794 = vpop.permute.xlu0 %793
      %v796 = vadd.f32 %v786, %v794
      %v797 = vtanh.pop %v796
      %799 = vrot.lane.b32.xlu0 %v797, 32
      %v800 = vpop.permute.xlu0 %799
      %v802 = vmul.f32 %v780, %v800
      %v803 = vstv %s650
      %vm804 = vcmp.lt.s32.totalorder %v803, %v635
      %v805 = vstv %s651
      %vm806 = vcmp.lt.s32.totalorder %v805, %v635
      %v807 = vsel %vm804, 1, 0
      %808 = vset.pattern.permute.xlu0 0
      %809 = vperm.xlu0 %808, %v807
      %v810 = vpop.permute.xlu0 %809
      %vm811 = vcmp.eq.s32.totalorder %v810, 1
      %v812 = vsel %vm811, %v774, 0.0
      %814 = vrot.lane.b32.xlu0 %v812, 64
      %v815 = vpop.permute.xlu0 %814
      %817 = vst.msk [vmem:[%s422] sm:$0xff] %vm479, %v815
      %v818 = vsel %vm806, 1, 0
      %819 = vset.pattern.permute.xlu0 0
      %820 = vperm.xlu0 %819, %v818
      %v821 = vpop.permute.xlu0 %820
      %vm822 = vcmp.eq.s32.totalorder %v821, 1
      %v823 = vsel %vm822, %v802, 0.0
      %825 = vrot.lane.b32.xlu0 %v823, 64
      %v826 = vpop.permute.xlu0 %825
      %828 = vst.msk [vmem:[%s429 + $0x18] sm:$0xff] %vm479, %v826
      %830 = vrot.lane.b32.xlu0 %v644, 64
      %v831 = vpop.permute.xlu0 %830
      %v833 = vsel %vm811, %v774, %v831
      %v834 = vsel %vm811, %v768, %v756
      %835 = vrot.lane.b32.xlu0 %v646, 64
      %v836 = vpop.permute.xlu0 %835
      %v838 = vsel %vm822, %v802, %v836
      %v839 = vsel %vm822, %v796, %v784
      %s840 = sadd.s32 %s650, 1
      %s841 = ssub.s32 6, %s650
      %843 = vrot.lane.b32.xlu0 %v833, 64
      %v844 = vpop.permute.xlu0 %843
      %847 = vrot.lane.b32.xlu0 %v838, 96
      %v848 = vpop.permute.xlu0 %847
      %v850 = vsel %vm479, %v844, %v848
      %v851 = vpack.c.bf16 %v850, %v850
      %v853 = vsel %vm698, %v851, 0
      %855 = vmatprep.subr.bf16.mxu0 0
      %856 = vmatpush1.bf16.msra.mxu0 0
      %857 = vmatprep.subr.bf16.mxu0 0
      %858 = vmatpush1.bf16.msra.mxu0 0
      %859 = vmatprep.subr.bf16.mxu0 0
      %860 = vmatpush1.bf16.msra.mxu0 0
      %861 = vmatprep.subr.bf16.mxu0 0
      %862 = vmatpush1.bf16.msra.mxu0 0
      %863 = vmatprep.subr.bf16.mxu0 %v689
      %864 = vmatpush1.bf16.msra.mxu0 %v688
      %865 = vmatprep.subr.bf16.mxu0 %v687
      %866 = vmatpush1.bf16.msra.mxu0 %v686
      %867 = vmatprep.subr.bf16.mxu0 %v685
      %868 = vmatpush1.bf16.msra.mxu0 %v684
      %869 = vmatprep.subr.bf16.mxu0 %v683
      %870 = vmatpush1.bf16.msra.mxu0 %v682
      %871 = vmatprep.subr.bf16.mxu0 0
      %872 = vmatpush2.bf16.msra.mxu0 0
      %873 = vmatprep.subr.bf16.mxu0 0
      %874 = vmatpush2.bf16.msra.mxu0 0
      %875 = vmatprep.subr.bf16.mxu0 0
      %876 = vmatpush2.bf16.msra.mxu0 0
      %877 = vmatprep.subr.bf16.mxu0 0
      %878 = vmatpush2.bf16.msra.mxu0 0
      %879 = vmatprep.subr.bf16.mxu0 0
      %880 = vmatpush2.bf16.msra.mxu0 0
      %881 = vmatprep.subr.bf16.mxu0 0
      %882 = vmatpush2.bf16.msra.mxu0 0
      %883 = vmatprep.subr.bf16.mxu0 0
      %884 = vmatpush2.bf16.msra.mxu0 0
      %885 = vmatprep.subr.bf16.mxu0 0
      %886 = vmatpush2.bf16.msra.mxu0 0
      %887 = vmatprep.mubr.bf16.mxu0 0
      %888 = vmatmul.mubr.bf16.gmra.mxu0 %v853
      %v889 = vpop.f32.mrf.mxu0
      %v890 = vadd.f32 0.0, %v889
      %v891 = vpop.f32.mrf.mxu0
      %v892 = vadd.f32 0.0, %v891
      %v893 = vpop.f32.mrf.mxu0
      %v894 = vpop.f32.mrf.mxu0
      %895 = vdwg.mxu0
      %v896 = vld [vmem:[#allocation2 + $0x8] sm:$0xff]
      %v897 = vadd.f32 %v896, %v890
      %v898 = vld [vmem:[#allocation3 + $0x10] sm:$0xff]
      %v899 = vadd.f32 %v898, %v892
      %v900 = vxor.u32 %v897, 2147483648
      %v901 = vmul.f32 %v900, 1.442695
      %v902 = vpow.pop %v901
      %v903 = vadd.f32 %v902, 1.0
      %v904 = vrcp.pop %v903
      %v905 = vmul.f32 1.0, %v904
      %v906 = vtanh.pop %v897
      %v907 = vmul.f32 %v905, %v834
      %909 = vrot.lane.b32.xlu0 %v906, 32
      %v910 = vpop.permute.xlu0 %909
      %v912 = vmul.f32 %v905, %v910
      %914 = vrot.lane.b32.xlu0 %v912, 32
      %v915 = vpop.permute.xlu0 %914
      %v917 = vadd.f32 %v907, %v915
      %v918 = vtanh.pop %v917
      %920 = vrot.lane.b32.xlu0 %v918, 32
      %v921 = vpop.permute.xlu0 %920
      %v923 = vmul.f32 %v905, %v921
      %v924 = vxor.u32 %v899, 2147483648
      %v925 = vmul.f32 %v924, 1.442695
      %v926 = vpow.pop %v925
      %v927 = vadd.f32 %v926, 1.0
      %v928 = vrcp.pop %v927
      %v929 = vmul.f32 1.0, %v928
      %v930 = vtanh.pop %v899
      %v931 = vmul.f32 %v929, %v839
      %933 = vrot.lane.b32.xlu0 %v930, 32
      %v934 = vpop.permute.xlu0 %933
      %v936 = vmul.f32 %v929, %v934
      %938 = vrot.lane.b32.xlu0 %v936, 32
      %v939 = vpop.permute.xlu0 %938
      %v941 = vadd.f32 %v931, %v939
      %v942 = vtanh.pop %v941
      %944 = vrot.lane.b32.xlu0 %v942, 32
      %v945 = vpop.permute.xlu0 %944
      %v947 = vmul.f32 %v929, %v945
      %v948 = vstv %s840
      %vm949 = vcmp.lt.s32.totalorder %v948, %v635
      %v950 = vstv %s841
      %vm951 = vcmp.lt.s32.totalorder %v950, %v635
      %v952 = vsel %vm949, 1, 0
      %953 = vset.pattern.permute.xlu0 0
      %954 = vperm.xlu0 %953, %v952
      %v955 = vpop.permute.xlu0 %954
      %vm956 = vcmp.eq.s32.totalorder %v955, 1
      %v957 = vsel %vm956, %v923, 0.0
      %959 = vrot.lane.b32.xlu0 %v957, 64
      %v960 = vpop.permute.xlu0 %959
      %962 = vst.msk [vmem:[%s422 + $0x8] sm:$0xff] %vm479, %v960
      %v963 = vsel %vm951, 1, 0
      %964 = vset.pattern.permute.xlu0 0
      %965 = vperm.xlu0 %964, %v963
      %v966 = vpop.permute.xlu0 %965
      %vm967 = vcmp.eq.s32.totalorder %v966, 1
      %v968 = vsel %vm967, %v947, 0.0
      %970 = vrot.lane.b32.xlu0 %v968, 64
      %v971 = vpop.permute.xlu0 %970
      %973 = vst.msk [vmem:[%s429 + $0x10] sm:$0xff] %vm479, %v971
      %v974 = vsel %vm956, %v923, %v833
      %v975 = vsel %vm956, %v917, %v834
      %v976 = vsel %vm967, %v947, %v838
      %v977 = vsel %vm967, %v941, %v839
      %s978 = sadd.s32 %s650, 2
      %s979 = ssub.s32 5, %s650
      %981 = vrot.lane.b32.xlu0 %v974, 64
      %v982 = vpop.permute.xlu0 %981
      %985 = vrot.lane.b32.xlu0 %v976, 96
      %v986 = vpop.permute.xlu0 %985
      %v988 = vsel %vm479, %v982, %v986
      %v989 = vpack.c.bf16 %v988, %v988
      %v991 = vsel %vm698, %v989, 0
      %993 = vmatprep.subr.bf16.mxu0 0
      %994 = vmatpush1.bf16.msra.mxu0 0
      %995 = vmatprep.subr.bf16.mxu0 0
      %996 = vmatpush1.bf16.msra.mxu0 0
      %997 = vmatprep.subr.bf16.mxu0 0
      %998 = vmatpush1.bf16.msra.mxu0 0
      %999 = vmatprep.subr.bf16.mxu0 0
      %1000 = vmatpush1.bf16.msra.mxu0 0
      %1001 = vmatprep.subr.bf16.mxu0 %v689
      %1002 = vmatpush1.bf16.msra.mxu0 %v688
      %1003 = vmatprep.subr.bf16.mxu0 %v687
      %1004 = vmatpush1.bf16.msra.mxu0 %v686
      %1005 = vmatprep.subr.bf16.mxu0 %v685
      %1006 = vmatpush1.bf16.msra.mxu0 %v684
      %1007 = vmatprep.subr.bf16.mxu0 %v683
      %1008 = vmatpush1.bf16.msra.mxu0 %v682
      %1009 = vmatprep.subr.bf16.mxu0 0
      %1010 = vmatpush2.bf16.msra.mxu0 0
      %1011 = vmatprep.subr.bf16.mxu0 0
      %1012 = vmatpush2.bf16.msra.mxu0 0
      %1013 = vmatprep.subr.bf16.mxu0 0
      %1014 = vmatpush2.bf16.msra.mxu0 0
      %1015 = vmatprep.subr.bf16.mxu0 0
      %1016 = vmatpush2.bf16.msra.mxu0 0
      %1017 = vmatprep.subr.bf16.mxu0 0
      %1018 = vmatpush2.bf16.msra.mxu0 0
      %1019 = vmatprep.subr.bf16.mxu0 0
      %1020 = vmatpush2.bf16.msra.mxu0 0
      %1021 = vmatprep.subr.bf16.mxu0 0
      %1022 = vmatpush2.bf16.msra.mxu0 0
      %1023 = vmatprep.subr.bf16.mxu0 0
      %1024 = vmatpush2.bf16.msra.mxu0 0
      %1025 = vmatprep.mubr.bf16.mxu0 0
      %1026 = vmatmul.mubr.bf16.gmra.mxu0 %v991
      %v1027 = vpop.f32.mrf.mxu0
      %v1028 = vadd.f32 0.0, %v1027
      %v1029 = vpop.f32.mrf.mxu0
      %v1030 = vadd.f32 0.0, %v1029
      %v1031 = vpop.f32.mrf.mxu0
      %v1032 = vpop.f32.mrf.mxu0
      %1033 = vdwg.mxu0
      %v1034 = vld [vmem:[#allocation2 + $0x10] sm:$0xff]
      %v1035 = vadd.f32 %v1034, %v1028
      %v1036 = vld [vmem:[#allocation3 + $0x8] sm:$0xff]
      %v1037 = vadd.f32 %v1036, %v1030
      %v1038 = vxor.u32 %v1035, 2147483648
      %v1039 = vmul.f32 %v1038, 1.442695
      %v1040 = vpow.pop %v1039
      %v1041 = vadd.f32 %v1040, 1.0
      %v1042 = vrcp.pop %v1041
      %v1043 = vmul.f32 1.0, %v1042
      %v1044 = vtanh.pop %v1035
      %v1045 = vmul.f32 %v1043, %v975
      %1047 = vrot.lane.b32.xlu0 %v1044, 32
      %v1048 = vpop.permute.xlu0 %1047
      %v1050 = vmul.f32 %v1043, %v1048
      %1052 = vrot.lane.b32.xlu0 %v1050, 32
      %v1053 = vpop.permute.xlu0 %1052
      %v1055 = vadd.f32 %v1045, %v1053
      %v1056 = vtanh.pop %v1055
      %1058 = vrot.lane.b32.xlu0 %v1056, 32
      %v1059 = vpop.permute.xlu0 %1058
      %v1061 = vmul.f32 %v1043, %v1059
      %v1062 = vxor.u32 %v1037, 2147483648
      %v1063 = vmul.f32 %v1062, 1.442695
      %v1064 = vpow.pop %v1063
      %v1065 = vadd.f32 %v1064, 1.0
      %v1066 = vrcp.pop %v1065
      %v1067 = vmul.f32 1.0, %v1066
      %v1068 = vtanh.pop %v1037
      %v1069 = vmul.f32 %v1067, %v977
      %1071 = vrot.lane.b32.xlu0 %v1068, 32
      %v1072 = vpop.permute.xlu0 %1071
      %v1074 = vmul.f32 %v1067, %v1072
      %1076 = vrot.lane.b32.xlu0 %v1074, 32
      %v1077 = vpop.permute.xlu0 %1076
      %v1079 = vadd.f32 %v1069, %v1077
      %v1080 = vtanh.pop %v1079
      %1082 = vrot.lane.b32.xlu0 %v1080, 32
      %v1083 = vpop.permute.xlu0 %1082
      %v1085 = vmul.f32 %v1067, %v1083
      %v1086 = vstv %s978
      %vm1087 = vcmp.lt.s32.totalorder %v1086, %v635
      %v1088 = vstv %s979
      %vm1089 = vcmp.lt.s32.totalorder %v1088, %v635
      %v1090 = vsel %vm1087, 1, 0
      %1091 = vset.pattern.permute.xlu0 0
      %1092 = vperm.xlu0 %1091, %v1090
      %v1093 = vpop.permute.xlu0 %1092
      %vm1094 = vcmp.eq.s32.totalorder %v1093, 1
      %v1095 = vsel %vm1094, %v1061, 0.0
      %1097 = vrot.lane.b32.xlu0 %v1095, 64
      %v1098 = vpop.permute.xlu0 %1097
      %1100 = vst.msk [vmem:[%s422 + $0x10] sm:$0xff] %vm479, %v1098
      %v1101 = vsel %vm1089, 1, 0
      %1102 = vset.pattern.permute.xlu0 0
      %1103 = vperm.xlu0 %1102, %v1101
      %v1104 = vpop.permute.xlu0 %1103
      %vm1105 = vcmp.eq.s32.totalorder %v1104, 1
      %v1106 = vsel %vm1105, %v1085, 0.0
      %1108 = vrot.lane.b32.xlu0 %v1106, 64
      %v1109 = vpop.permute.xlu0 %1108
      %1111 = vst.msk [vmem:[%s429 + $0x8] sm:$0xff] %vm479, %v1109
      %v1112 = vsel %vm1094, %v1061, %v974
      %v1113 = vsel %vm1094, %v1055, %v975
      %v1114 = vsel %vm1105, %v1085, %v976
      %v1115 = vsel %vm1105, %v1079, %v977
      %s1116 = sadd.s32 %s650, 3
      %s1117 = ssub.s32 4, %s650
      %1119 = vrot.lane.b32.xlu0 %v1112, 64
      %v1120 = vpop.permute.xlu0 %1119
      %1123 = vrot.lane.b32.xlu0 %v1114, 96
      %v1124 = vpop.permute.xlu0 %1123
      %v1126 = vsel %vm479, %v1120, %v1124
      %v1127 = vpack.c.bf16 %v1126, %v1126
      %v1129 = vsel %vm698, %v1127, 0
      %1131 = vmatprep.subr.bf16.mxu0 0
      %1132 = vmatpush1.bf16.msra.mxu0 0
      %1133 = vmatprep.subr.bf16.mxu0 0
      %1134 = vmatpush1.bf16.msra.mxu0 0
      %1135 = vmatprep.subr.bf16.mxu0 0
      %1136 = vmatpush1.bf16.msra.mxu0 0
      %1137 = vmatprep.subr.bf16.mxu0 0
      %1138 = vmatpush1.bf16.msra.mxu0 0
      %1139 = vmatprep.subr.bf16.mxu0 %v689
      %1140 = vmatpush1.bf16.msra.mxu0 %v688
      %1141 = vmatprep.subr.bf16.mxu0 %v687
      %1142 = vmatpush1.bf16.msra.mxu0 %v686
      %1143 = vmatprep.subr.bf16.mxu0 %v685
      %1144 = vmatpush1.bf16.msra.mxu0 %v684
      %1145 = vmatprep.subr.bf16.mxu0 %v683
      %1146 = vmatpush1.bf16.msra.mxu0 %v682
      %1147 = vmatprep.subr.bf16.mxu0 0
      %1148 = vmatpush2.bf16.msra.mxu0 0
      %1149 = vmatprep.subr.bf16.mxu0 0
      %1150 = vmatpush2.bf16.msra.mxu0 0
      %1151 = vmatprep.subr.bf16.mxu0 0
      %1152 = vmatpush2.bf16.msra.mxu0 0
      %1153 = vmatprep.subr.bf16.mxu0 0
      %1154 = vmatpush2.bf16.msra.mxu0 0
      %1155 = vmatprep.subr.bf16.mxu0 0
      %1156 = vmatpush2.bf16.msra.mxu0 0
      %1157 = vmatprep.subr.bf16.mxu0 0
      %1158 = vmatpush2.bf16.msra.mxu0 0
      %1159 = vmatprep.subr.bf16.mxu0 0
      %1160 = vmatpush2.bf16.msra.mxu0 0
      %1161 = vmatprep.subr.bf16.mxu0 0
      %1162 = vmatpush2.bf16.msra.mxu0 0
      %1163 = vmatprep.mubr.bf16.mxu0 0
      %1164 = vmatmul.mubr.bf16.gmra.mxu0 %v1129
      %v1165 = vpop.f32.mrf.mxu0
      %v1166 = vadd.f32 0.0, %v1165
      %v1167 = vpop.f32.mrf.mxu0
      %v1168 = vadd.f32 0.0, %v1167
      %v1169 = vpop.f32.mrf.mxu0
      %v1170 = vpop.f32.mrf.mxu0
      %1171 = vdwg.mxu0
      %v1172 = vld [vmem:[#allocation2 + $0x18] sm:$0xff]
      %v1173 = vadd.f32 %v1172, %v1166
      %v1174 = vld [vmem:[#allocation3] sm:$0xff]
      %v1175 = vadd.f32 %v1174, %v1168
      %v1176 = vxor.u32 %v1173, 2147483648
      %v1177 = vmul.f32 %v1176, 1.442695
      %v1178 = vpow.pop %v1177
      %v1179 = vadd.f32 %v1178, 1.0
      %v1180 = vrcp.pop %v1179
      %v1181 = vmul.f32 1.0, %v1180
      %v1182 = vtanh.pop %v1173
      %v1183 = vmul.f32 %v1181, %v1113
      %1185 = vrot.lane.b32.xlu0 %v1182, 32
      %v1186 = vpop.permute.xlu0 %1185
      %v1188 = vmul.f32 %v1181, %v1186
      %1190 = vrot.lane.b32.xlu0 %v1188, 32
      %v1191 = vpop.permute.xlu0 %1190
      %v1193 = vadd.f32 %v1183, %v1191
      %v1194 = vtanh.pop %v1193
      %1196 = vrot.lane.b32.xlu0 %v1194, 32
      %v1197 = vpop.permute.xlu0 %1196
      %v1199 = vmul.f32 %v1181, %v1197
      %v1200 = vxor.u32 %v1175, 2147483648
      %v1201 = vmul.f32 %v1200, 1.442695
      %v1202 = vpow.pop %v1201
      %v1203 = vadd.f32 %v1202, 1.0
      %v1204 = vrcp.pop %v1203
      %v1205 = vmul.f32 1.0, %v1204
      %v1206 = vtanh.pop %v1175
      %v1207 = vmul.f32 %v1205, %v1115
      %1209 = vrot.lane.b32.xlu0 %v1206, 32
      %v1210 = vpop.permute.xlu0 %1209
      %v1212 = vmul.f32 %v1205, %v1210
      %1214 = vrot.lane.b32.xlu0 %v1212, 32
      %v1215 = vpop.permute.xlu0 %1214
      %v1217 = vadd.f32 %v1207, %v1215
      %v1218 = vtanh.pop %v1217
      %1220 = vrot.lane.b32.xlu0 %v1218, 32
      %v1221 = vpop.permute.xlu0 %1220
      %v1223 = vmul.f32 %v1205, %v1221
      %v1224 = vstv %s1116
      %vm1225 = vcmp.lt.s32.totalorder %v1224, %v635
      %v1226 = vstv %s1117
      %vm1227 = vcmp.lt.s32.totalorder %v1226, %v635
      %v1228 = vsel %vm1225, 1, 0
      %1229 = vset.pattern.permute.xlu0 0
      %1230 = vperm.xlu0 %1229, %v1228
      %v1231 = vpop.permute.xlu0 %1230
      %vm1232 = vcmp.eq.s32.totalorder %v1231, 1
      %v1233 = vsel %vm1232, %v1199, 0.0
      %1235 = vrot.lane.b32.xlu0 %v1233, 64
      %v1236 = vpop.permute.xlu0 %1235
      %1238 = vst.msk [vmem:[%s422 + $0x18] sm:$0xff] %vm479, %v1236
      %v1239 = vsel %vm1227, 1, 0
      %1240 = vset.pattern.permute.xlu0 0
      %1241 = vperm.xlu0 %1240, %v1239
      %v1242 = vpop.permute.xlu0 %1241
      %vm1243 = vcmp.eq.s32.totalorder %v1242, 1
      %v1244 = vsel %vm1243, %v1223, 0.0
      %1246 = vrot.lane.b32.xlu0 %v1244, 64
      %v1247 = vpop.permute.xlu0 %1246
      %1249 = vst.msk [vmem:[%s429] sm:$0xff] %vm479, %v1247
      %v1250 = vsel %vm1232, %v1199, %v1112
      %v1251 = vsel %vm1232, %v1193, %v1113
      %v1252 = vsel %vm1243, %v1223, %v1114
      %v1253 = vsel %vm1243, %v1217, %v1115
      %1255 = vrot.lane.b32.xlu0 %v1250, 64
      %v1256 = vpop.permute.xlu0 %1255
      %1258 = vst.msk [vmem:[%s10] sm:$0xff] %vm479, %v1256
      %1260 = vrot.lane.b32.xlu0 %v1252, 64
      %v1261 = vpop.permute.xlu0 %1260
      %1263 = vst.msk [vmem:[%s645] sm:$0xff] %vm479, %v1261
      %1265 = vrot.lane.b32.xlu0 %v1251, 96
      %v1266 = vpop.permute.xlu0 %1265
      %1268 = vst.msk [vmem:[%s11] sm:$0xff] %vm479, %v1266
      %1270 = vrot.lane.b32.xlu0 %v1253, 96
      %v1271 = vpop.permute.xlu0 %1270
      %1273 = vst.msk [vmem:[%s648] sm:$0xff] %vm479, %v1271
      %s1274 = smul.u32 4, %s23
      %p1275 = scmp.lt.s32.totalorder %s1274, 7
      %s1276 = scalar_select %p1275, %s1274, 7
      %s1277 = smul.addr %s1276, 8
      %s1278 = scalar_lea.vmem %s8, %s1277
      %s1279 = ssub.s32 1, %s23
      %s1280 = smul.u32 4, %s1279
      %p1281 = scmp.lt.s32.totalorder %s1280, 7
      %s1282 = scalar_select %p1281, %s1280, 7
      %s1283 = smul.addr %s1282, 8
      %s1284 = scalar_lea.vmem %s9, %s1283
      // Predicated region
      $region57: #{encoder_forward.2} parent=51 // pred_check
        %p1285 = pneg %p221
      $region58: #{encoder_forward.2} parent=51 // pred_check_branch
        %1287 = sbr.rel (%p1285) target = $region60
      $region59: #{encoder_forward.2} parent=51 // pred_region
        %s1288 = smul.u32 4, %s23
      $region60: #{encoder_forward.2} parent=51 // pred_fallthru
        _
      // Predicated region
      $region61: #{encoder_forward.2} parent=51 // pred_check
        %p1289 = pneg %p249
      $region62: #{encoder_forward.2} parent=51 // pred_check_branch
        %1291 = sbr.rel (%p1289) target = $region64
      $region63: #{encoder_forward.2} parent=51 // pred_region
        %s1292 = ssub.s32 1, %s23
        %s1293 = smul.u32 4, %s1292
      $region64: #{encoder_forward.2} parent=51 // pred_fallthru
        _
      // Predicated region
      $region65: #{encoder_forward.2} parent=51 // pred_check
        %p1294 = pneg %p270
      $region66: #{encoder_forward.2} parent=51 // pred_check_branch
        %1296 = sbr.rel (%p1294) target = $region68
      $region67: #{encoder_forward.2} parent=51 // pred_region
        _
      $region68: #{encoder_forward.2} parent=51 // pred_fallthru
        _
      // Predicated region
      $region69: #{encoder_forward.2} parent=51 // pred_check
        %p1297 = pneg %p291
      $region70: #{encoder_forward.2} parent=51 // pred_check_branch
        %1299 = sbr.rel (%p1297) target = $region72
      $region71: #{encoder_forward.2} parent=51 // pred_region
        _
      $region72: #{encoder_forward.2} parent=51 // pred_fallthru
        _
      // Predicated region
      $region73: #{encoder_forward.2} parent=51 // pred_check
        %p1300 = pneg %p270
      $region74: #{encoder_forward.2} parent=51 // pred_check_branch
        %1302 = sbr.rel (%p1300) target = $region76
      $region75: #{encoder_forward.2} parent=51 // pred_region
        _
      $region76: #{encoder_forward.2} parent=51 // pred_fallthru
        _
      // Predicated region
      $region77: #{encoder_forward.2} parent=51 // pred_check
        %p1303 = pneg %p291
      $region78: #{encoder_forward.2} parent=51 // pred_check_branch
        %1305 = sbr.rel (%p1303) target = $region80
      $region79: #{encoder_forward.2} parent=51 // pred_region
        _
      $region80: #{encoder_forward.2} parent=51 // pred_fallthru
        _
    $region52: #{encoder_forward.2} parent=5 // pred_fallthru
      _
    %p1306 = scmp.le.s32.totalorder 2, %s18
    // Predicated region
    $region81: #{encoder_forward.2} parent=5 // pred_check
      %p1307 = pneg %p1306
    $region82: #{encoder_forward.2} parent=5 // pred_check_branch
      %1309 = sbr.rel (%p1307) target = $region84
    $region83: #{encoder_forward.2} parent=5 // pred_region
      %s1310 = ssub.s32 %s18, 2
      // Predicated region
      $region85: #{encoder_forward.2} parent=83 // pred_check
        %p1311 = pneg %p227
      $region86: #{encoder_forward.2} parent=83 // pred_check_branch
        %1313 = sbr.rel (%p1311) target = $region88
      $region87: #{encoder_forward.2} parent=83 // pred_region
        %s1314 = smul.u32 4, %s24
        %p1315 = scmp.lt.s32.totalorder %s1314, 7
        %s1316 = scalar_select %p1315, %s1314, 7
        %s1317 = smul.addr %s1316, 8
        %s1318 = scalar_lea.vmem %s8, %s1317
      $region88: #{encoder_forward.2} parent=83 // pred_fallthru
        _
      // Predicated region
      $region89: #{encoder_forward.2} parent=83 // pred_check
        %p1319 = pneg %p255
      $region90: #{encoder_forward.2} parent=83 // pred_check_branch
        %1321 = sbr.rel (%p1319) target = $region92
      $region91: #{encoder_forward.2} parent=83 // pred_region
        %s1322 = ssub.s32 1, %s24
        %s1323 = smul.u32 4, %s1322
        %p1324 = scmp.lt.s32.totalorder %s1323, 7
        %s1325 = scalar_select %p1324, %s1323, 7
        %s1326 = smul.addr %s1325, 8
        %s1327 = scalar_lea.vmem %s9, %s1326
      $region92: #{encoder_forward.2} parent=83 // pred_fallthru
        _
    $region84: #{encoder_forward.2} parent=5 // pred_fallthru
      _
  $region6: #{encoder_forward.2} parent=0 // loop_footer
    %s22 = sadd.s32 1, %s18
  $region7: #{encoder_forward.2} parent=0 // loop_footer_branch
    %17 = sbr.rel target = $region3
  $region8: #{encoder_forward.2} parent=0 // loop_exit
    _

</llo_original>
